<compile_context>
chip_gen: v7x
topology: tpu7x:2x2x1
jax: 0.10.0
libtpu: 0.0.40
codegen_flags: <defaults>
</compile_context>

<pallas_src>
import jax
import jax.numpy as jnp
from jax.experimental import pallas as pl
from jax.experimental.pallas import tpu as pltpu


def rnn_lin_kernel(x_ref, w_ref, misc_ref, out_ref):
    """2-layer tanh RNN over the last batch row + Linear head, one invocation.

    x_ref    : (T, I)  f32   inputs of the last batch element (time-major)
    w_ref    : (3H, H) bf16  [Whh0^T ; W1ih^T ; W1hh^T] stacked row-wise
    misc_ref : (8, H)  f32   rows: [Wih0^T row 0..I-1, b0, b1, lin_w, lin_b, pad...]
    out_ref  : (1, T)  f32   lin(y[-1]) (transposed back in the wrapper)
    """
    T, I = x_ref.shape
    H = w_ref.shape[1]
    f32 = jnp.float32
    bf16 = jnp.bfloat16

    # Static slices of the packed bf16 weight slab (MXU operands).
    whh0_bf = w_ref[0:H, :]          # (H, H)
    w1ih_bf = w_ref[H:2 * H, :]      # (H, H)
    w1hh_bf = w_ref[2 * H:3 * H, :]  # (H, H)

    # Static slices of the packed f32 misc slab.
    b0 = misc_ref[I:I + 1, :]            # (1, H)
    b1 = misc_ref[I + 1:I + 2, :]        # (1, H)
    lw = misc_ref[I + 2:I + 3, :]        # (1, H)
    lb = misc_ref[I + 3:I + 4, 0:1]      # (1, 1)

    # Prologue: layer-0 input projection on the VPU (K = I = 2 -> 2 FMAs).
    x = x_ref[...]                                               # (T, I)
    xp = b0
    for i in range(I):
        xp = xp + x[:, i:i + 1] * misc_ref[i:i + 1, :]           # (T, H) f32

    # hidden=None -> zero initial hidden state; carried in registers.
    h0_bf = jnp.zeros((1, H), bf16)
    h1_bf = jnp.zeros((1, H), bf16)

    h1_rows = []
    for t in range(T):                 # static trip count -> fully unrolled
        # layer 0: input projection precomputed; one bf16 recurrent matmul
        h0 = jnp.tanh(xp[t:t + 1, :]
                      + jnp.dot(h0_bf, whh0_bf, preferred_element_type=f32))
        h0_bf = h0.astype(bf16)
        # layer 1: two independent bf16 dots (no per-step lane concat)
        h1 = jnp.tanh(jnp.dot(h0_bf, w1ih_bf, preferred_element_type=f32)
                      + jnp.dot(h1_bf, w1hh_bf, preferred_element_type=f32)
                      + b1)
        h1_bf = h1.astype(bf16)
        h1_rows.append(h1)

    # Epilogue: deferred Linear head, one f32 matmul + one small store.
    h_all = jnp.concatenate(h1_rows, axis=0)                     # (T, H) f32
    out_ref[...] = jax.lax.dot_general(
        lw, h_all,
        dimension_numbers=(((1,), (1,)), ((), ())),
        preferred_element_type=f32) + lb                         # (1, T)


def net_forward(x, params):
    """x: (B, T, I) float32 (PyTorch batch_first). Returns (T,) float32."""
    B, T, I = x.shape
    H = params["whh0"].shape[0]

    # Only y[-1] (last batch element) feeds the head; RNN rows are independent.
    x_last = x[-1].astype(jnp.float32)                            # (T, I)

    # bf16 weight slab: [Whh0^T ; W1ih^T ; W1hh^T]  -> (3H, H)
    w_slab = jnp.concatenate(
        [params["whh0"].T, params["wih1"].T, params["whh1"].T],
        axis=0).astype(jnp.bfloat16)

    # f32 misc slab: Wih0^T rows, combined biases, lin weight/bias, pad to 8.
    wih0_t = params["wih0"].T.astype(jnp.float32)                 # (I, H)
    b0 = (params["bih0"] + params["bhh0"]).astype(jnp.float32)    # (H,)
    b1 = (params["bih1"] + params["bhh1"]).astype(jnp.float32)    # (H,)
    lw = params["lin_w"].reshape(H).astype(jnp.float32)           # (H,)
    lb = jnp.broadcast_to(params["lin_b"].astype(jnp.float32), (H,))
    rows = [wih0_t[i] for i in range(I)] + [b0, b1, lw, lb]
    n_pad = (-len(rows)) % 8
    rows += [jnp.zeros((H,), jnp.float32)] * n_pad
    misc = jnp.stack(rows, axis=0)                                # (8, H)

    out = pl.pallas_call(
        rnn_lin_kernel,
        out_shape=jax.ShapeDtypeStruct((1, T), jnp.float32),
        in_specs=[pl.BlockSpec(memory_space=pltpu.MemorySpace.VMEM)] * 3,
        out_specs=pl.BlockSpec(memory_space=pltpu.MemorySpace.VMEM),
    )(x_last, w_slab, misc)

    return out[0]    # (T,)  == lin(y[-1]).squeeze(1)


def ref_forward(x, params):
    """Pure-JAX f32 reference mirroring the PyTorch forward (full batch)."""
    B, T, I = x.shape
    H = params["whh0"].shape[0]
    h0 = jnp.zeros((B, H), jnp.float32)
    h1 = jnp.zeros((B, H), jnp.float32)
    ys = []
    for t in range(T):
        xt = x[:, t, :]
        h0 = jnp.tanh(xt @ params["wih0"].T + params["bih0"]
                      + h0 @ params["whh0"].T + params["bhh0"])
        h1 = jnp.tanh(h0 @ params["wih1"].T + params["bih1"]
                      + h1 @ params["whh1"].T + params["bhh1"])
        ys.append(h1)
    y = jnp.stack(ys, axis=1)          # (B, T, H)
    y_last = y[-1]                     # (T, H)  == PyTorch y[-1] with batch_first
    return (y_last @ params["lin_w"].T + params["lin_b"])[:, 0]


def init_params(key, input_size, hidden_size):
    """Deterministic init matching PyTorch shapes (U(-1/sqrt(H),1/sqrt(H)) for
    RNN, N(0,0.01) weight / 0.1 bias for the Linear head)."""
    H, I = hidden_size, input_size
    s = 1.0 / jnp.sqrt(jnp.float32(H))
    ks = jax.random.split(key, 9)
    u = lambda k, shape: jax.random.uniform(k, shape, jnp.float32, -s, s)
    return {
        "wih0": u(ks[0], (H, I)),
        "whh0": u(ks[1], (H, H)),
        "bih0": u(ks[2], (H,)),
        "bhh0": u(ks[3], (H,)),
        "wih1": u(ks[4], (H, H)),
        "whh1": u(ks[5], (H, H)),
        "bih1": u(ks[6], (H,)),
        "bhh1": u(ks[7], (H,)),
        "lin_w": 0.01 * jax.random.normal(ks[8], (1, H), jnp.float32),
        "lin_b": jnp.full((1,), 0.1, jnp.float32),
    }


if __name__ == "__main__":
    B, T, I, H = 2, 8, 2, 32
    key = jax.random.PRNGKey(0)
    pkey, xkey = jax.random.split(key)
    params = init_params(pkey, I, H)
    x = jax.random.normal(xkey, (B, T, I), jnp.float32)

    out = jax.block_until_ready(net_forward(x, params))
    ref = jax.block_until_ready(ref_forward(x, params))

    assert out.shape == (T,), out.shape
    # bf16 MXU operands -> relax tolerance vs the f32 reference.
    assert jnp.allclose(out, ref, atol=2e-3, rtol=2e-3), (out, ref)
    print("KERNEL_OK")
</pallas_src>

<mosaic_0001>
module attributes {stable_mosaic.version = 11 : i64} {
  func.func @rnn_lin_kernel(%arg0: memref<8x2xf32, #tpu.memory_space<vmem>>, %arg1: memref<96x32xbf16, #tpu.memory_space<vmem>>, %arg2: memref<8x32xf32, #tpu.memory_space<vmem>>, %arg3: memref<1x8xf32, #tpu.memory_space<vmem>>) attributes {dimension_semantics = [], scalar_prefetch = 0 : i64, scratch_operands = 0 : i64, tpu.core_type = #tpu.core_type<tc>} {
    %c0 = arith.constant 0 : index
    %c0_0 = arith.constant 0 : index
    %0 = vector.load %arg1[%c0, %c0_0] : memref<96x32xbf16, #tpu.memory_space<vmem>>, vector<32x32xbf16>
    %c32 = arith.constant 32 : index
    %c0_1 = arith.constant 0 : index
    %1 = vector.load %arg1[%c32, %c0_1] : memref<96x32xbf16, #tpu.memory_space<vmem>>, vector<32x32xbf16>
    %c64 = arith.constant 64 : index
    %c0_2 = arith.constant 0 : index
    %2 = vector.load %arg1[%c64, %c0_2] : memref<96x32xbf16, #tpu.memory_space<vmem>>, vector<32x32xbf16>
    %c2 = arith.constant 2 : index
    %c0_3 = arith.constant 0 : index
    %3 = vector.load %arg2[%c2, %c0_3] : memref<8x32xf32, #tpu.memory_space<vmem>>, vector<1x32xf32>
    %c3 = arith.constant 3 : index
    %c0_4 = arith.constant 0 : index
    %4 = vector.load %arg2[%c3, %c0_4] : memref<8x32xf32, #tpu.memory_space<vmem>>, vector<1x32xf32>
    %c4 = arith.constant 4 : index
    %c0_5 = arith.constant 0 : index
    %5 = vector.load %arg2[%c4, %c0_5] : memref<8x32xf32, #tpu.memory_space<vmem>>, vector<1x32xf32>
    %c5 = arith.constant 5 : index
    %c0_6 = arith.constant 0 : index
    %6 = vector.load %arg2[%c5, %c0_6] : memref<8x32xf32, #tpu.memory_space<vmem>>, vector<1x1xf32>
    %c0_7 = arith.constant 0 : index
    %c0_8 = arith.constant 0 : index
    %7 = vector.load %arg0[%c0_7, %c0_8] : memref<8x2xf32, #tpu.memory_space<vmem>>, vector<8x2xf32>
    %8 = vector.extract_strided_slice %7 {offsets = [0, 0], sizes = [8, 1], strides = [1, 1]} : vector<8x2xf32> to vector<8x1xf32>
    %c0_9 = arith.constant 0 : index
    %c0_10 = arith.constant 0 : index
    %9 = vector.load %arg2[%c0_9, %c0_10] : memref<8x32xf32, #tpu.memory_space<vmem>>, vector<1x32xf32>
    %10 = vector.broadcast %8 : vector<8x1xf32> to vector<8x32xf32>
    %11 = vector.broadcast %9 : vector<1x32xf32> to vector<8x32xf32>
    %12 = arith.mulf %10, %11 : vector<8x32xf32>
    %13 = vector.broadcast %3 : vector<1x32xf32> to vector<8x32xf32>
    %14 = arith.addf %13, %12 : vector<8x32xf32>
    %15 = vector.extract_strided_slice %7 {offsets = [0, 1], sizes = [8, 1], strides = [1, 1]} : vector<8x2xf32> to vector<8x1xf32>
    %c1 = arith.constant 1 : index
    %c0_11 = arith.constant 0 : index
    %16 = vector.load %arg2[%c1, %c0_11] : memref<8x32xf32, #tpu.memory_space<vmem>>, vector<1x32xf32>
    %17 = vector.broadcast %15 : vector<8x1xf32> to vector<8x32xf32>
    %18 = vector.broadcast %16 : vector<1x32xf32> to vector<8x32xf32>
    %19 = arith.mulf %17, %18 : vector<8x32xf32>
    %20 = arith.addf %14, %19 : vector<8x32xf32>
    %cst = arith.constant 0.000000e+00 : bf16
    %21 = vector.broadcast %cst : bf16 to vector<1x32xbf16>
    %cst_12 = arith.constant 0.000000e+00 : bf16
    %22 = vector.broadcast %cst_12 : bf16 to vector<1x32xbf16>
    %23 = vector.extract_strided_slice %20 {offsets = [0, 0], sizes = [1, 32], strides = [1, 1]} : vector<8x32xf32> to vector<1x32xf32>
    %cst_13 = arith.constant dense<0.000000e+00> : vector<1x32xf32>
    %24 = tpu.matmul %21, %0, %cst_13 {dimension_numbers = #tpu.dot_dimension_numbers<[1], [0], [0], [1], [0, 0, 1, 1], [], []>} : vector<1x32xbf16>, vector<32x32xbf16>, vector<1x32xf32> -> vector<1x32xf32>
    %25 = arith.addf %23, %24 : vector<1x32xf32>
    %26 = math.tanh %25 : vector<1x32xf32>
    %27 = arith.truncf %26 : vector<1x32xf32> to vector<1x32xbf16>
    %cst_14 = arith.constant dense<0.000000e+00> : vector<1x32xf32>
    %28 = tpu.matmul %27, %1, %cst_14 {dimension_numbers = #tpu.dot_dimension_numbers<[1], [0], [0], [1], [0, 0, 1, 1], [], []>} : vector<1x32xbf16>, vector<32x32xbf16>, vector<1x32xf32> -> vector<1x32xf32>
    %cst_15 = arith.constant dense<0.000000e+00> : vector<1x32xf32>
    %29 = tpu.matmul %22, %2, %cst_15 {dimension_numbers = #tpu.dot_dimension_numbers<[1], [0], [0], [1], [0, 0, 1, 1], [], []>} : vector<1x32xbf16>, vector<32x32xbf16>, vector<1x32xf32> -> vector<1x32xf32>
    %30 = arith.addf %28, %29 : vector<1x32xf32>
    %31 = arith.addf %30, %4 : vector<1x32xf32>
    %32 = math.tanh %31 : vector<1x32xf32>
    %33 = arith.truncf %32 : vector<1x32xf32> to vector<1x32xbf16>
    %34 = vector.extract_strided_slice %20 {offsets = [1, 0], sizes = [1, 32], strides = [1, 1]} : vector<8x32xf32> to vector<1x32xf32>
    %cst_16 = arith.constant dense<0.000000e+00> : vector<1x32xf32>
    %35 = tpu.matmul %27, %0, %cst_16 {dimension_numbers = #tpu.dot_dimension_numbers<[1], [0], [0], [1], [0, 0, 1, 1], [], []>} : vector<1x32xbf16>, vector<32x32xbf16>, vector<1x32xf32> -> vector<1x32xf32>
    %36 = arith.addf %34, %35 : vector<1x32xf32>
    %37 = math.tanh %36 : vector<1x32xf32>
    %38 = arith.truncf %37 : vector<1x32xf32> to vector<1x32xbf16>
    %cst_17 = arith.constant dense<0.000000e+00> : vector<1x32xf32>
    %39 = tpu.matmul %38, %1, %cst_17 {dimension_numbers = #tpu.dot_dimension_numbers<[1], [0], [0], [1], [0, 0, 1, 1], [], []>} : vector<1x32xbf16>, vector<32x32xbf16>, vector<1x32xf32> -> vector<1x32xf32>
    %cst_18 = arith.constant dense<0.000000e+00> : vector<1x32xf32>
    %40 = tpu.matmul %33, %2, %cst_18 {dimension_numbers = #tpu.dot_dimension_numbers<[1], [0], [0], [1], [0, 0, 1, 1], [], []>} : vector<1x32xbf16>, vector<32x32xbf16>, vector<1x32xf32> -> vector<1x32xf32>
    %41 = arith.addf %39, %40 : vector<1x32xf32>
    %42 = arith.addf %41, %4 : vector<1x32xf32>
    %43 = math.tanh %42 : vector<1x32xf32>
    %44 = arith.truncf %43 : vector<1x32xf32> to vector<1x32xbf16>
    %45 = vector.extract_strided_slice %20 {offsets = [2, 0], sizes = [1, 32], strides = [1, 1]} : vector<8x32xf32> to vector<1x32xf32>
    %cst_19 = arith.constant dense<0.000000e+00> : vector<1x32xf32>
    %46 = tpu.matmul %38, %0, %cst_19 {dimension_numbers = #tpu.dot_dimension_numbers<[1], [0], [0], [1], [0, 0, 1, 1], [], []>} : vector<1x32xbf16>, vector<32x32xbf16>, vector<1x32xf32> -> vector<1x32xf32>
    %47 = arith.addf %45, %46 : vector<1x32xf32>
    %48 = math.tanh %47 : vector<1x32xf32>
    %49 = arith.truncf %48 : vector<1x32xf32> to vector<1x32xbf16>
    %cst_20 = arith.constant dense<0.000000e+00> : vector<1x32xf32>
    %50 = tpu.matmul %49, %1, %cst_20 {dimension_numbers = #tpu.dot_dimension_numbers<[1], [0], [0], [1], [0, 0, 1, 1], [], []>} : vector<1x32xbf16>, vector<32x32xbf16>, vector<1x32xf32> -> vector<1x32xf32>
    %cst_21 = arith.constant dense<0.000000e+00> : vector<1x32xf32>
    %51 = tpu.matmul %44, %2, %cst_21 {dimension_numbers = #tpu.dot_dimension_numbers<[1], [0], [0], [1], [0, 0, 1, 1], [], []>} : vector<1x32xbf16>, vector<32x32xbf16>, vector<1x32xf32> -> vector<1x32xf32>
    %52 = arith.addf %50, %51 : vector<1x32xf32>
    %53 = arith.addf %52, %4 : vector<1x32xf32>
    %54 = math.tanh %53 : vector<1x32xf32>
    %55 = arith.truncf %54 : vector<1x32xf32> to vector<1x32xbf16>
    %56 = vector.extract_strided_slice %20 {offsets = [3, 0], sizes = [1, 32], strides = [1, 1]} : vector<8x32xf32> to vector<1x32xf32>
    %cst_22 = arith.constant dense<0.000000e+00> : vector<1x32xf32>
    %57 = tpu.matmul %49, %0, %cst_22 {dimension_numbers = #tpu.dot_dimension_numbers<[1], [0], [0], [1], [0, 0, 1, 1], [], []>} : vector<1x32xbf16>, vector<32x32xbf16>, vector<1x32xf32> -> vector<1x32xf32>
    %58 = arith.addf %56, %57 : vector<1x32xf32>
    %59 = math.tanh %58 : vector<1x32xf32>
    %60 = arith.truncf %59 : vector<1x32xf32> to vector<1x32xbf16>
    %cst_23 = arith.constant dense<0.000000e+00> : vector<1x32xf32>
    %61 = tpu.matmul %60, %1, %cst_23 {dimension_numbers = #tpu.dot_dimension_numbers<[1], [0], [0], [1], [0, 0, 1, 1], [], []>} : vector<1x32xbf16>, vector<32x32xbf16>, vector<1x32xf32> -> vector<1x32xf32>
    %cst_24 = arith.constant dense<0.000000e+00> : vector<1x32xf32>
    %62 = tpu.matmul %55, %2, %cst_24 {dimension_numbers = #tpu.dot_dimension_numbers<[1], [0], [0], [1], [0, 0, 1, 1], [], []>} : vector<1x32xbf16>, vector<32x32xbf16>, vector<1x32xf32> -> vector<1x32xf32>
    %63 = arith.addf %61, %62 : vector<1x32xf32>
    %64 = arith.addf %63, %4 : vector<1x32xf32>
    %65 = math.tanh %64 : vector<1x32xf32>
    %66 = arith.truncf %65 : vector<1x32xf32> to vector<1x32xbf16>
    %67 = vector.extract_strided_slice %20 {offsets = [4, 0], sizes = [1, 32], strides = [1, 1]} : vector<8x32xf32> to vector<1x32xf32>
    %cst_25 = arith.constant dense<0.000000e+00> : vector<1x32xf32>
    %68 = tpu.matmul %60, %0, %cst_25 {dimension_numbers = #tpu.dot_dimension_numbers<[1], [0], [0], [1], [0, 0, 1, 1], [], []>} : vector<1x32xbf16>, vector<32x32xbf16>, vector<1x32xf32> -> vector<1x32xf32>
    %69 = arith.addf %67, %68 : vector<1x32xf32>
    %70 = math.tanh %69 : vector<1x32xf32>
    %71 = arith.truncf %70 : vector<1x32xf32> to vector<1x32xbf16>
    %cst_26 = arith.constant dense<0.000000e+00> : vector<1x32xf32>
    %72 = tpu.matmul %71, %1, %cst_26 {dimension_numbers = #tpu.dot_dimension_numbers<[1], [0], [0], [1], [0, 0, 1, 1], [], []>} : vector<1x32xbf16>, vector<32x32xbf16>, vector<1x32xf32> -> vector<1x32xf32>
    %cst_27 = arith.constant dense<0.000000e+00> : vector<1x32xf32>
    %73 = tpu.matmul %66, %2, %cst_27 {dimension_numbers = #tpu.dot_dimension_numbers<[1], [0], [0], [1], [0, 0, 1, 1], [], []>} : vector<1x32xbf16>, vector<32x32xbf16>, vector<1x32xf32> -> vector<1x32xf32>
    %74 = arith.addf %72, %73 : vector<1x32xf32>
    %75 = arith.addf %74, %4 : vector<1x32xf32>
    %76 = math.tanh %75 : vector<1x32xf32>
    %77 = arith.truncf %76 : vector<1x32xf32> to vector<1x32xbf16>
    %78 = vector.extract_strided_slice %20 {offsets = [5, 0], sizes = [1, 32], strides = [1, 1]} : vector<8x32xf32> to vector<1x32xf32>
    %cst_28 = arith.constant dense<0.000000e+00> : vector<1x32xf32>
    %79 = tpu.matmul %71, %0, %cst_28 {dimension_numbers = #tpu.dot_dimension_numbers<[1], [0], [0], [1], [0, 0, 1, 1], [], []>} : vector<1x32xbf16>, vector<32x32xbf16>, vector<1x32xf32> -> vector<1x32xf32>
    %80 = arith.addf %78, %79 : vector<1x32xf32>
    %81 = math.tanh %80 : vector<1x32xf32>
    %82 = arith.truncf %81 : vector<1x32xf32> to vector<1x32xbf16>
    %cst_29 = arith.constant dense<0.000000e+00> : vector<1x32xf32>
    %83 = tpu.matmul %82, %1, %cst_29 {dimension_numbers = #tpu.dot_dimension_numbers<[1], [0], [0], [1], [0, 0, 1, 1], [], []>} : vector<1x32xbf16>, vector<32x32xbf16>, vector<1x32xf32> -> vector<1x32xf32>
    %cst_30 = arith.constant dense<0.000000e+00> : vector<1x32xf32>
    %84 = tpu.matmul %77, %2, %cst_30 {dimension_numbers = #tpu.dot_dimension_numbers<[1], [0], [0], [1], [0, 0, 1, 1], [], []>} : vector<1x32xbf16>, vector<32x32xbf16>, vector<1x32xf32> -> vector<1x32xf32>
    %85 = arith.addf %83, %84 : vector<1x32xf32>
    %86 = arith.addf %85, %4 : vector<1x32xf32>
    %87 = math.tanh %86 : vector<1x32xf32>
    %88 = arith.truncf %87 : vector<1x32xf32> to vector<1x32xbf16>
    %89 = vector.extract_strided_slice %20 {offsets = [6, 0], sizes = [1, 32], strides = [1, 1]} : vector<8x32xf32> to vector<1x32xf32>
    %cst_31 = arith.constant dense<0.000000e+00> : vector<1x32xf32>
    %90 = tpu.matmul %82, %0, %cst_31 {dimension_numbers = #tpu.dot_dimension_numbers<[1], [0], [0], [1], [0, 0, 1, 1], [], []>} : vector<1x32xbf16>, vector<32x32xbf16>, vector<1x32xf32> -> vector<1x32xf32>
    %91 = arith.addf %89, %90 : vector<1x32xf32>
    %92 = math.tanh %91 : vector<1x32xf32>
    %93 = arith.truncf %92 : vector<1x32xf32> to vector<1x32xbf16>
    %cst_32 = arith.constant dense<0.000000e+00> : vector<1x32xf32>
    %94 = tpu.matmul %93, %1, %cst_32 {dimension_numbers = #tpu.dot_dimension_numbers<[1], [0], [0], [1], [0, 0, 1, 1], [], []>} : vector<1x32xbf16>, vector<32x32xbf16>, vector<1x32xf32> -> vector<1x32xf32>
    %cst_33 = arith.constant dense<0.000000e+00> : vector<1x32xf32>
    %95 = tpu.matmul %88, %2, %cst_33 {dimension_numbers = #tpu.dot_dimension_numbers<[1], [0], [0], [1], [0, 0, 1, 1], [], []>} : vector<1x32xbf16>, vector<32x32xbf16>, vector<1x32xf32> -> vector<1x32xf32>
    %96 = arith.addf %94, %95 : vector<1x32xf32>
    %97 = arith.addf %96, %4 : vector<1x32xf32>
    %98 = math.tanh %97 : vector<1x32xf32>
    %99 = arith.truncf %98 : vector<1x32xf32> to vector<1x32xbf16>
    %100 = vector.extract_strided_slice %20 {offsets = [7, 0], sizes = [1, 32], strides = [1, 1]} : vector<8x32xf32> to vector<1x32xf32>
    %cst_34 = arith.constant dense<0.000000e+00> : vector<1x32xf32>
    %101 = tpu.matmul %93, %0, %cst_34 {dimension_numbers = #tpu.dot_dimension_numbers<[1], [0], [0], [1], [0, 0, 1, 1], [], []>} : vector<1x32xbf16>, vector<32x32xbf16>, vector<1x32xf32> -> vector<1x32xf32>
    %102 = arith.addf %100, %101 : vector<1x32xf32>
    %103 = math.tanh %102 : vector<1x32xf32>
    %104 = arith.truncf %103 : vector<1x32xf32> to vector<1x32xbf16>
    %cst_35 = arith.constant dense<0.000000e+00> : vector<1x32xf32>
    %105 = tpu.matmul %104, %1, %cst_35 {dimension_numbers = #tpu.dot_dimension_numbers<[1], [0], [0], [1], [0, 0, 1, 1], [], []>} : vector<1x32xbf16>, vector<32x32xbf16>, vector<1x32xf32> -> vector<1x32xf32>
    %cst_36 = arith.constant dense<0.000000e+00> : vector<1x32xf32>
    %106 = tpu.matmul %99, %2, %cst_36 {dimension_numbers = #tpu.dot_dimension_numbers<[1], [0], [0], [1], [0, 0, 1, 1], [], []>} : vector<1x32xbf16>, vector<32x32xbf16>, vector<1x32xf32> -> vector<1x32xf32>
    %107 = arith.addf %105, %106 : vector<1x32xf32>
    %108 = arith.addf %107, %4 : vector<1x32xf32>
    %109 = math.tanh %108 : vector<1x32xf32>
    %110 = tpu.concatenate %32, %43, %54, %65, %76, %87, %98, %109 in 0 : vector<1x32xf32>, vector<1x32xf32>, vector<1x32xf32>, vector<1x32xf32>, vector<1x32xf32>, vector<1x32xf32>, vector<1x32xf32>, vector<1x32xf32> -> vector<8x32xf32>
    %cst_37 = arith.constant dense<0.000000e+00> : vector<1x8xf32>
    %111 = tpu.matmul %5, %110, %cst_37 {dimension_numbers = #tpu.dot_dimension_numbers<[1], [1], [0], [0], [0, 0, 1, 0], [], []>} : vector<1x32xf32>, vector<8x32xf32>, vector<1x8xf32> -> vector<1x8xf32>
    %112 = vector.broadcast %6 : vector<1x1xf32> to vector<1x8xf32>
    %113 = arith.addf %111, %112 : vector<1x8xf32>
    %c0_38 = arith.constant 0 : index
    %c0_39 = arith.constant 0 : index
    %114 = vector.load %arg3[%c0_38, %c0_39] : memref<1x8xf32, #tpu.memory_space<vmem>>, vector<1x8xf32>
    tpu.vector_store %arg3[%c0_38, %c0_39], %113 {strides = array<i32>} : memref<1x8xf32, #tpu.memory_space<vmem>>, vector<1x8xf32>,
    return
  }
}

</mosaic_0001>

<llo_original>
// kernel: tpu_custom_call.1
$region0: #{tpu_custom_call.1}
  #allocation0 [shape = 'u32[]', space=smem, size = 0x4, offset = 0x4, fixed_abs, tag = 'smem constant byte address 0x4 - core index']
  #allocation1 [shape = 'u32[144,128]{1,0:T(1,128)}', space=vmem, size = 0x12000, scoped, tag = 'internal scratch']
  %s0 = inlined_call_operand.vmem [shape: f32[8,2], index: 0, kind: input, shape index: {}]
  %s1 = inlined_call_operand.vmem [shape: bf16[96,32], index: 1, kind: input, shape index: {}]
  %s2 = inlined_call_operand.vmem [shape: f32[8,32], index: 2, kind: input, shape index: {}]
  %s3 = inlined_call_operand.hbm [shape: f32[1,8], index: 3, kind: output, shape index: {}]
  %s4 = sld [smem:[#allocation0]]
  $region22: #{tpu_custom_call.1} parent=0
    _
  %s6 = ssub.s32 1, %s4
  %s7 = scalar_select 0, %s6, %s4
  $region1: #{tpu_custom_call.1} parent=0
    #allocation2 [shape = 'u8[512]{0}', space=vmem, size = 0x400, scoped, tag = 'output window, operand 0, single buffered']
    #allocation3 [shape = 's32[1]{0}', space=sflag, size = 0x4, scoped, tag = 'scoped memory for tpu_custom_call.1']
    %8 = vsyncpa [#allocation3], 0
    // Predicated region
    $region2: #{tpu_custom_call.1} parent=1 // pred_check
      _
    $region3: #{tpu_custom_call.1} parent=1 // pred_check_branch
      %10 = sbr.rel (0) target = $region5
    $region4: #{tpu_custom_call.1} parent=1 // pred_region
      _
    $region5: #{tpu_custom_call.1} parent=1 // pred_fallthru
      _
    // Predicated region
    $region6: #{tpu_custom_call.1} parent=1 // pred_check
      _
    $region7: #{tpu_custom_call.1} parent=1 // pred_check_branch
      %12 = sbr.rel (0) target = $region9
    $region8: #{tpu_custom_call.1} parent=1 // pred_region
      _
    $region9: #{tpu_custom_call.1} parent=1 // pred_fallthru
      _
    // Predicated region
    $region10: #{tpu_custom_call.1} parent=1 // pred_check
      _
    $region11: #{tpu_custom_call.1} parent=1 // pred_check_branch
      %14 = sbr.rel (0) target = $region13
    $region12: #{tpu_custom_call.1} parent=1 // pred_region
      _
    $region13: #{tpu_custom_call.1} parent=1 // pred_fallthru
      _
    %v16 = vld [vmem:[%s1] sm:$0xf]
    %v17 = vld [vmem:[%s1 + $0x4] sm:$0xf]
    %v18 = vld [vmem:[%s1 + $0x8] sm:$0xf]
    %v19 = vld [vmem:[%s1 + $0xc] sm:$0xf]
    %v20 = vld [vmem:[%s1 + $0x10] sm:$0xf]
    %v21 = vld [vmem:[%s1 + $0x14] sm:$0xf]
    %v22 = vld [vmem:[%s1 + $0x18] sm:$0xf]
    %v23 = vld [vmem:[%s1 + $0x1c] sm:$0xf]
    %v24 = vld [vmem:[%s1 + $0x20] sm:$0xf]
    %v25 = vld [vmem:[%s1 + $0x24] sm:$0xf]
    %v26 = vld [vmem:[%s1 + $0x28] sm:$0xf]
    %v27 = vld [vmem:[%s1 + $0x2c] sm:$0xf]
    %v28 = vld [vmem:[%s2 + $0x2] sm:$0x1]
    %v29 = vld [vmem:[%s2 + $0x3] sm:$0x1]
    %v30 = vld [vmem:[%s2 + $0x4] sm:$0x1]
    %v31 = vld [vmem:[%s2 + $0x5] sm:$0x1]
    %v32 = vld [vmem:[%s0] sm:$0xff]
    %v33 = vld [vmem:[%s2] sm:$0x1]
    %35 = vset.pattern.permute.xlu0 0
    %36 = vperm.xlu0 %35, %v32
    %v37 = vpop.permute.xlu0 %36
    %v39 = vlaneseq
    %v40 = vshrl.u32 %v39, 7
    %v41 = vsub.s32 0, %v40
    %v42 = vrot.slane %v33, %v41
    %v43 = vmul.f32 %v37, %v42
    %v44 = vlaneseq
    %v45 = vshrl.u32 %v44, 7
    %v46 = vsub.s32 0, %v45
    %v47 = vrot.slane %v28, %v46
    %v48 = vadd.f32 %v47, %v43
    %v49 = vld [vmem:[%s2 + $0x1] sm:$0x1]
    %50 = vset.pattern.permute.xlu0 1
    %51 = vperm.xlu0 %50, %v32
    %v52 = vpop.permute.xlu0 %51
    %v54 = vlaneseq
    %v55 = vshrl.u32 %v54, 7
    %v56 = vsub.s32 0, %v55
    %v57 = vrot.slane %v49, %v56
    %v58 = vmul.f32 %v52, %v57
    %v59 = vadd.f32 %v48, %v58
    %v64 = vunpack.c.l.b16 %v16
    %v65 = vunpack.c.l.b16 %v17
    %v66 = vunpack.c.l.b16 %v18
    %v67 = vunpack.c.l.b16 %v19
    %v68 = vpack.c.b16 %v65, %v64
    %v69 = vpack.c.b16 %v67, %v66
    %vm72 = vcmask 261120
    %v74 = vsel %vm72, 0, 0
    %76 = vmatprep.subr.bf16.mxu0 0
    %77 = vmatpush1.bf16.msra.mxu0 %v68
    %78 = vmatprep.subr.bf16.mxu0 0
    %79 = vmatpush1.bf16.msra.mxu0 %v69
    %80 = vmatprep.subr.bf16.mxu0 0
    %81 = vmatpush1.bf16.msra.mxu0 0
    %82 = vmatprep.subr.bf16.mxu0 0
    %83 = vmatpush1.bf16.msra.mxu0 0
    %84 = vmatprep.subr.bf16.mxu0 0
    %85 = vmatpush1.bf16.msra.mxu0 0
    %86 = vmatprep.subr.bf16.mxu0 0
    %87 = vmatpush1.bf16.msra.mxu0 0
    %88 = vmatprep.subr.bf16.mxu0 0
    %89 = vmatpush1.bf16.msra.mxu0 0
    %90 = vmatprep.subr.bf16.mxu0 0
    %91 = vmatpush1.bf16.msra.mxu0 0
    %92 = vmatprep.subr.bf16.mxu0 0
    %93 = vmatpush1.bf16.msra.mxu0 0
    %94 = vmatprep.subr.bf16.mxu0 0
    %95 = vmatpush1.bf16.msra.mxu0 0
    %96 = vmatprep.subr.bf16.mxu0 0
    %97 = vmatpush1.bf16.msra.mxu0 0
    %98 = vmatprep.subr.bf16.mxu0 0
    %99 = vmatpush1.bf16.msra.mxu0 0
    %100 = vmatprep.subr.bf16.mxu0 0
    %101 = vmatpush1.bf16.msra.mxu0 0
    %102 = vmatprep.subr.bf16.mxu0 0
    %103 = vmatpush1.bf16.msra.mxu0 0
    %104 = vmatprep.subr.bf16.mxu0 0
    %105 = vmatpush1.bf16.msra.mxu0 0
    %106 = vmatprep.subr.bf16.mxu0 0
    %107 = vmatpush1.bf16.msra.mxu0 0
    %108 = vmatprep.mubr.bf16.mxu0 0
    %109 = vmatmul.mubr.bf16.gmra.mrb[0].mxu0 %v74
    %v110 = vpop.f32.mrb[0].mxu0
    %v111 = vadd.f32 0.0, %v110
    %v112 = vpop.f32.mrb[0].mxu0
    %v113 = vpop.f32.mrb[0].mxu0
    %v114 = vpop.f32.mrb[0].mxu0
    %115 = vdwg.mxu0
    %v116 = vadd.f32 %v59, %v111
    %v117 = vtanh.pop %v116
    %v118 = vpack.c.bf16 %v117, %v117
    %v123 = vunpack.c.l.b16 %v24
    %v124 = vunpack.c.l.b16 %v25
    %v125 = vunpack.c.l.b16 %v26
    %v126 = vunpack.c.l.b16 %v27
    %v127 = vpack.c.b16 %v124, %v123
    %v128 = vpack.c.b16 %v126, %v125
    %131 = vmatprep.subr.bf16.mxu0 0
    %132 = vmatpush1.bf16.msra.mxu0 %v127
    %133 = vmatprep.subr.bf16.mxu0 0
    %134 = vmatpush1.bf16.msra.mxu0 %v128
    %135 = vmatprep.subr.bf16.mxu0 0
    %136 = vmatpush1.bf16.msra.mxu0 0
    %137 = vmatprep.subr.bf16.mxu0 0
    %138 = vmatpush1.bf16.msra.mxu0 0
    %139 = vmatprep.subr.bf16.mxu0 0
    %140 = vmatpush1.bf16.msra.mxu0 0
    %141 = vmatprep.subr.bf16.mxu0 0
    %142 = vmatpush1.bf16.msra.mxu0 0
    %143 = vmatprep.subr.bf16.mxu0 0
    %144 = vmatpush1.bf16.msra.mxu0 0
    %145 = vmatprep.subr.bf16.mxu0 0
    %146 = vmatpush1.bf16.msra.mxu0 0
    %147 = vmatprep.subr.bf16.mxu0 0
    %148 = vmatpush1.bf16.msra.mxu0 0
    %149 = vmatprep.subr.bf16.mxu0 0
    %150 = vmatpush1.bf16.msra.mxu0 0
    %151 = vmatprep.subr.bf16.mxu0 0
    %152 = vmatpush1.bf16.msra.mxu0 0
    %153 = vmatprep.subr.bf16.mxu0 0
    %154 = vmatpush1.bf16.msra.mxu0 0
    %155 = vmatprep.subr.bf16.mxu0 0
    %156 = vmatpush1.bf16.msra.mxu0 0
    %157 = vmatprep.subr.bf16.mxu0 0
    %158 = vmatpush1.bf16.msra.mxu0 0
    %159 = vmatprep.subr.bf16.mxu0 0
    %160 = vmatpush1.bf16.msra.mxu0 0
    %161 = vmatprep.subr.bf16.mxu0 0
    %162 = vmatpush1.bf16.msra.mxu0 0
    %163 = vmatprep.mubr.bf16.mxu0 0
    %164 = vmatmul.mubr.bf16.gmra.mrb[0].mxu0 %v74
    %v165 = vpop.f32.mrb[0].mxu0
    %v166 = vadd.f32 0.0, %v165
    %v167 = vpop.f32.mrb[0].mxu0
    %v168 = vpop.f32.mrb[0].mxu0
    %v169 = vpop.f32.mrb[0].mxu0
    %170 = vdwg.mxu0
    %v175 = vunpack.c.l.b16 %v20
    %v176 = vunpack.c.l.b16 %v21
    %v177 = vunpack.c.l.b16 %v22
    %v178 = vunpack.c.l.b16 %v23
    %v179 = vpack.c.b16 %v176, %v175
    %v180 = vpack.c.b16 %v178, %v177
    %v184 = vsel %vm72, %v118, 0
    %186 = vmatprep.subr.bf16.mxu0 0
    %187 = vmatpush1.bf16.msra.mxu0 %v179
    %188 = vmatprep.subr.bf16.mxu0 0
    %189 = vmatpush1.bf16.msra.mxu0 %v180
    %190 = vmatprep.subr.bf16.mxu0 0
    %191 = vmatpush1.bf16.msra.mxu0 0
    %192 = vmatprep.subr.bf16.mxu0 0
    %193 = vmatpush1.bf16.msra.mxu0 0
    %194 = vmatprep.subr.bf16.mxu0 0
    %195 = vmatpush1.bf16.msra.mxu0 0
    %196 = vmatprep.subr.bf16.mxu0 0
    %197 = vmatpush1.bf16.msra.mxu0 0
    %198 = vmatprep.subr.bf16.mxu0 0
    %199 = vmatpush1.bf16.msra.mxu0 0
    %200 = vmatprep.subr.bf16.mxu0 0
    %201 = vmatpush1.bf16.msra.mxu0 0
    %202 = vmatprep.subr.bf16.mxu0 0
    %203 = vmatpush1.bf16.msra.mxu0 0
    %204 = vmatprep.subr.bf16.mxu0 0
    %205 = vmatpush1.bf16.msra.mxu0 0
    %206 = vmatprep.subr.bf16.mxu0 0
    %207 = vmatpush1.bf16.msra.mxu0 0
    %208 = vmatprep.subr.bf16.mxu0 0
    %209 = vmatpush1.bf16.msra.mxu0 0
    %210 = vmatprep.subr.bf16.mxu0 0
    %211 = vmatpush1.bf16.msra.mxu0 0
    %212 = vmatprep.subr.bf16.mxu0 0
    %213 = vmatpush1.bf16.msra.mxu0 0
    %214 = vmatprep.subr.bf16.mxu0 0
    %215 = vmatpush1.bf16.msra.mxu0 0
    %216 = vmatprep.subr.bf16.mxu0 0
    %217 = vmatpush1.bf16.msra.mxu0 0
    %218 = vmatprep.mubr.bf16.mxu0 0
    %219 = vmatmul.mubr.bf16.gmra.mrb[0].mxu0 %v184
    %v220 = vpop.f32.mrb[0].mxu0
    %v221 = vadd.f32 %v166, %v220
    %v222 = vpop.f32.mrb[0].mxu0
    %v223 = vpop.f32.mrb[0].mxu0
    %v224 = vpop.f32.mrb[0].mxu0
    %225 = vdwg.mxu0
    %v226 = vadd.f32 %v221, %v29
    %v227 = vtanh.pop %v226
    %v228 = vpack.c.bf16 %v227, %v227
    %229 = vmatprep.subr.bf16.mxu0 0
    %230 = vmatpush1.bf16.msra.mxu0 %v68
    %231 = vmatprep.subr.bf16.mxu0 0
    %232 = vmatpush1.bf16.msra.mxu0 %v69
    %233 = vmatprep.subr.bf16.mxu0 0
    %234 = vmatpush1.bf16.msra.mxu0 0
    %235 = vmatprep.subr.bf16.mxu0 0
    %236 = vmatpush1.bf16.msra.mxu0 0
    %237 = vmatprep.subr.bf16.mxu0 0
    %238 = vmatpush1.bf16.msra.mxu0 0
    %239 = vmatprep.subr.bf16.mxu0 0
    %240 = vmatpush1.bf16.msra.mxu0 0
    %241 = vmatprep.subr.bf16.mxu0 0
    %242 = vmatpush1.bf16.msra.mxu0 0
    %243 = vmatprep.subr.bf16.mxu0 0
    %244 = vmatpush1.bf16.msra.mxu0 0
    %245 = vmatprep.subr.bf16.mxu0 0
    %246 = vmatpush1.bf16.msra.mxu0 0
    %247 = vmatprep.subr.bf16.mxu0 0
    %248 = vmatpush1.bf16.msra.mxu0 0
    %249 = vmatprep.subr.bf16.mxu0 0
    %250 = vmatpush1.bf16.msra.mxu0 0
    %251 = vmatprep.subr.bf16.mxu0 0
    %252 = vmatpush1.bf16.msra.mxu0 0
    %253 = vmatprep.subr.bf16.mxu0 0
    %254 = vmatpush1.bf16.msra.mxu0 0
    %255 = vmatprep.subr.bf16.mxu0 0
    %256 = vmatpush1.bf16.msra.mxu0 0
    %257 = vmatprep.subr.bf16.mxu0 0
    %258 = vmatpush1.bf16.msra.mxu0 0
    %259 = vmatprep.subr.bf16.mxu0 0
    %260 = vmatpush1.bf16.msra.mxu0 0
    %261 = vmatprep.mubr.bf16.mxu0 0
    %262 = vmatmul.mubr.bf16.gmra.mrb[0].mxu0 %v184
    %v263 = vpop.f32.mrb[0].mxu0
    %v264 = vadd.f32 0.0, %v263
    %v265 = vpop.f32.mrb[0].mxu0
    %v266 = vpop.f32.mrb[0].mxu0
    %v267 = vpop.f32.mrb[0].mxu0
    %268 = vdwg.mxu0
    %v270 = vrot.slane %v264, 7
    %v272 = vadd.f32 %v59, %v270
    %v273 = vtanh.pop %v272
    %v274 = vpack.c.bf16 %v273, %v273
    %v276 = vsel %vm72, %v228, 0
    %278 = vmatprep.subr.bf16.mxu0 0
    %279 = vmatpush1.bf16.msra.mxu0 %v127
    %280 = vmatprep.subr.bf16.mxu0 0
    %281 = vmatpush1.bf16.msra.mxu0 %v128
    %282 = vmatprep.subr.bf16.mxu0 0
    %283 = vmatpush1.bf16.msra.mxu0 0
    %284 = vmatprep.subr.bf16.mxu0 0
    %285 = vmatpush1.bf16.msra.mxu0 0
    %286 = vmatprep.subr.bf16.mxu0 0
    %287 = vmatpush1.bf16.msra.mxu0 0
    %288 = vmatprep.subr.bf16.mxu0 0
    %289 = vmatpush1.bf16.msra.mxu0 0
    %290 = vmatprep.subr.bf16.mxu0 0
    %291 = vmatpush1.bf16.msra.mxu0 0
    %292 = vmatprep.subr.bf16.mxu0 0
    %293 = vmatpush1.bf16.msra.mxu0 0
    %294 = vmatprep.subr.bf16.mxu0 0
    %295 = vmatpush1.bf16.msra.mxu0 0
    %296 = vmatprep.subr.bf16.mxu0 0
    %297 = vmatpush1.bf16.msra.mxu0 0
    %298 = vmatprep.subr.bf16.mxu0 0
    %299 = vmatpush1.bf16.msra.mxu0 0
    %300 = vmatprep.subr.bf16.mxu0 0
    %301 = vmatpush1.bf16.msra.mxu0 0
    %302 = vmatprep.subr.bf16.mxu0 0
    %303 = vmatpush1.bf16.msra.mxu0 0
    %304 = vmatprep.subr.bf16.mxu0 0
    %305 = vmatpush1.bf16.msra.mxu0 0
    %306 = vmatprep.subr.bf16.mxu0 0
    %307 = vmatpush1.bf16.msra.mxu0 0
    %308 = vmatprep.subr.bf16.mxu0 0
    %309 = vmatpush1.bf16.msra.mxu0 0
    %310 = vmatprep.mubr.bf16.mxu0 0
    %311 = vmatmul.mubr.bf16.gmra.mrb[0].mxu0 %v276
    %v312 = vpop.f32.mrb[0].mxu0
    %v313 = vadd.f32 0.0, %v312
    %v314 = vpop.f32.mrb[0].mxu0
    %v315 = vpop.f32.mrb[0].mxu0
    %v316 = vpop.f32.mrb[0].mxu0
    %317 = vdwg.mxu0
    %v319 = vshrl.u32 %v274, 16
    %v322 = vsel %vm72, %v319, 0
    %324 = vmatprep.subr.bf16.mxu0 0
    %325 = vmatpush1.bf16.msra.mxu0 %v179
    %326 = vmatprep.subr.bf16.mxu0 0
    %327 = vmatpush1.bf16.msra.mxu0 %v180
    %328 = vmatprep.subr.bf16.mxu0 0
    %329 = vmatpush1.bf16.msra.mxu0 0
    %330 = vmatprep.subr.bf16.mxu0 0
    %331 = vmatpush1.bf16.msra.mxu0 0
    %332 = vmatprep.subr.bf16.mxu0 0
    %333 = vmatpush1.bf16.msra.mxu0 0
    %334 = vmatprep.subr.bf16.mxu0 0
    %335 = vmatpush1.bf16.msra.mxu0 0
    %336 = vmatprep.subr.bf16.mxu0 0
    %337 = vmatpush1.bf16.msra.mxu0 0
    %338 = vmatprep.subr.bf16.mxu0 0
    %339 = vmatpush1.bf16.msra.mxu0 0
    %340 = vmatprep.subr.bf16.mxu0 0
    %341 = vmatpush1.bf16.msra.mxu0 0
    %342 = vmatprep.subr.bf16.mxu0 0
    %343 = vmatpush1.bf16.msra.mxu0 0
    %344 = vmatprep.subr.bf16.mxu0 0
    %345 = vmatpush1.bf16.msra.mxu0 0
    %346 = vmatprep.subr.bf16.mxu0 0
    %347 = vmatpush1.bf16.msra.mxu0 0
    %348 = vmatprep.subr.bf16.mxu0 0
    %349 = vmatpush1.bf16.msra.mxu0 0
    %350 = vmatprep.subr.bf16.mxu0 0
    %351 = vmatpush1.bf16.msra.mxu0 0
    %352 = vmatprep.subr.bf16.mxu0 0
    %353 = vmatpush1.bf16.msra.mxu0 0
    %354 = vmatprep.subr.bf16.mxu0 0
    %355 = vmatpush1.bf16.msra.mxu0 0
    %356 = vmatprep.mubr.bf16.mxu0 0
    %357 = vmatmul.mubr.bf16.gmra.mrb[0].mxu0 %v322
    %v358 = vpop.f32.mrb[0].mxu0
    %v359 = vadd.f32 %v313, %v358
    %v360 = vpop.f32.mrb[0].mxu0
    %v361 = vpop.f32.mrb[0].mxu0
    %v362 = vpop.f32.mrb[0].mxu0
    %363 = vdwg.mxu0
    %v364 = vadd.f32 %v359, %v29
    %v365 = vtanh.pop %v364
    %v366 = vpack.c.bf16 %v365, %v365
    %367 = vmatprep.subr.bf16.mxu0 0
    %368 = vmatpush1.bf16.msra.mxu0 %v68
    %369 = vmatprep.subr.bf16.mxu0 0
    %370 = vmatpush1.bf16.msra.mxu0 %v69
    %371 = vmatprep.subr.bf16.mxu0 0
    %372 = vmatpush1.bf16.msra.mxu0 0
    %373 = vmatprep.subr.bf16.mxu0 0
    %374 = vmatpush1.bf16.msra.mxu0 0
    %375 = vmatprep.subr.bf16.mxu0 0
    %376 = vmatpush1.bf16.msra.mxu0 0
    %377 = vmatprep.subr.bf16.mxu0 0
    %378 = vmatpush1.bf16.msra.mxu0 0
    %379 = vmatprep.subr.bf16.mxu0 0
    %380 = vmatpush1.bf16.msra.mxu0 0
    %381 = vmatprep.subr.bf16.mxu0 0
    %382 = vmatpush1.bf16.msra.mxu0 0
    %383 = vmatprep.subr.bf16.mxu0 0
    %384 = vmatpush1.bf16.msra.mxu0 0
    %385 = vmatprep.subr.bf16.mxu0 0
    %386 = vmatpush1.bf16.msra.mxu0 0
    %387 = vmatprep.subr.bf16.mxu0 0
    %388 = vmatpush1.bf16.msra.mxu0 0
    %389 = vmatprep.subr.bf16.mxu0 0
    %390 = vmatpush1.bf16.msra.mxu0 0
    %391 = vmatprep.subr.bf16.mxu0 0
    %392 = vmatpush1.bf16.msra.mxu0 0
    %393 = vmatprep.subr.bf16.mxu0 0
    %394 = vmatpush1.bf16.msra.mxu0 0
    %395 = vmatprep.subr.bf16.mxu0 0
    %396 = vmatpush1.bf16.msra.mxu0 0
    %397 = vmatprep.subr.bf16.mxu0 0
    %398 = vmatpush1.bf16.msra.mxu0 0
    %399 = vmatprep.mubr.bf16.mxu0 0
    %400 = vmatmul.mubr.bf16.gmra.mrb[0].mxu0 %v322
    %v401 = vpop.f32.mrb[0].mxu0
    %v402 = vadd.f32 0.0, %v401
    %v403 = vpop.f32.mrb[0].mxu0
    %v404 = vpop.f32.mrb[0].mxu0
    %v405 = vpop.f32.mrb[0].mxu0
    %406 = vdwg.mxu0
    %v408 = vrot.slane %v402, 6
    %v410 = vadd.f32 %v59, %v408
    %v411 = vtanh.pop %v410
    %v412 = vpack.c.bf16 %v411, %v411
    %v414 = vsel %vm72, %v366, 0
    %416 = vmatprep.subr.bf16.mxu0 0
    %417 = vmatpush1.bf16.msra.mxu0 %v127
    %418 = vmatprep.subr.bf16.mxu0 0
    %419 = vmatpush1.bf16.msra.mxu0 %v128
    %420 = vmatprep.subr.bf16.mxu0 0
    %421 = vmatpush1.bf16.msra.mxu0 0
    %422 = vmatprep.subr.bf16.mxu0 0
    %423 = vmatpush1.bf16.msra.mxu0 0
    %424 = vmatprep.subr.bf16.mxu0 0
    %425 = vmatpush1.bf16.msra.mxu0 0
    %426 = vmatprep.subr.bf16.mxu0 0
    %427 = vmatpush1.bf16.msra.mxu0 0
    %428 = vmatprep.subr.bf16.mxu0 0
    %429 = vmatpush1.bf16.msra.mxu0 0
    %430 = vmatprep.subr.bf16.mxu0 0
    %431 = vmatpush1.bf16.msra.mxu0 0
    %432 = vmatprep.subr.bf16.mxu0 0
    %433 = vmatpush1.bf16.msra.mxu0 0
    %434 = vmatprep.subr.bf16.mxu0 0
    %435 = vmatpush1.bf16.msra.mxu0 0
    %436 = vmatprep.subr.bf16.mxu0 0
    %437 = vmatpush1.bf16.msra.mxu0 0
    %438 = vmatprep.subr.bf16.mxu0 0
    %439 = vmatpush1.bf16.msra.mxu0 0
    %440 = vmatprep.subr.bf16.mxu0 0
    %441 = vmatpush1.bf16.msra.mxu0 0
    %442 = vmatprep.subr.bf16.mxu0 0
    %443 = vmatpush1.bf16.msra.mxu0 0
    %444 = vmatprep.subr.bf16.mxu0 0
    %445 = vmatpush1.bf16.msra.mxu0 0
    %446 = vmatprep.subr.bf16.mxu0 0
    %447 = vmatpush1.bf16.msra.mxu0 0
    %448 = vmatprep.mubr.bf16.mxu0 0
    %449 = vmatmul.mubr.bf16.gmra.mrb[0].mxu0 %v414
    %v450 = vpop.f32.mrb[0].mxu0
    %v451 = vadd.f32 0.0, %v450
    %v452 = vpop.f32.mrb[0].mxu0
    %v453 = vpop.f32.mrb[0].mxu0
    %v454 = vpop.f32.mrb[0].mxu0
    %455 = vdwg.mxu0
    %v457 = vrot.slane %v412, 1
    %v459 = vsel %vm72, %v457, 0
    %461 = vmatprep.subr.bf16.mxu0 0
    %462 = vmatpush1.bf16.msra.mxu0 %v179
    %463 = vmatprep.subr.bf16.mxu0 0
    %464 = vmatpush1.bf16.msra.mxu0 %v180
    %465 = vmatprep.subr.bf16.mxu0 0
    %466 = vmatpush1.bf16.msra.mxu0 0
    %467 = vmatprep.subr.bf16.mxu0 0
    %468 = vmatpush1.bf16.msra.mxu0 0
    %469 = vmatprep.subr.bf16.mxu0 0
    %470 = vmatpush1.bf16.msra.mxu0 0
    %471 = vmatprep.subr.bf16.mxu0 0
    %472 = vmatpush1.bf16.msra.mxu0 0
    %473 = vmatprep.subr.bf16.mxu0 0
    %474 = vmatpush1.bf16.msra.mxu0 0
    %475 = vmatprep.subr.bf16.mxu0 0
    %476 = vmatpush1.bf16.msra.mxu0 0
    %477 = vmatprep.subr.bf16.mxu0 0
    %478 = vmatpush1.bf16.msra.mxu0 0
    %479 = vmatprep.subr.bf16.mxu0 0
    %480 = vmatpush1.bf16.msra.mxu0 0
    %481 = vmatprep.subr.bf16.mxu0 0
    %482 = vmatpush1.bf16.msra.mxu0 0
    %483 = vmatprep.subr.bf16.mxu0 0
    %484 = vmatpush1.bf16.msra.mxu0 0
    %485 = vmatprep.subr.bf16.mxu0 0
    %486 = vmatpush1.bf16.msra.mxu0 0
    %487 = vmatprep.subr.bf16.mxu0 0
    %488 = vmatpush1.bf16.msra.mxu0 0
    %489 = vmatprep.subr.bf16.mxu0 0
    %490 = vmatpush1.bf16.msra.mxu0 0
    %491 = vmatprep.subr.bf16.mxu0 0
    %492 = vmatpush1.bf16.msra.mxu0 0
    %493 = vmatprep.mubr.bf16.mxu0 0
    %494 = vmatmul.mubr.bf16.gmra.mrb[0].mxu0 %v459
    %v495 = vpop.f32.mrb[0].mxu0
    %v496 = vadd.f32 %v451, %v495
    %v497 = vpop.f32.mrb[0].mxu0
    %v498 = vpop.f32.mrb[0].mxu0
    %v499 = vpop.f32.mrb[0].mxu0
    %500 = vdwg.mxu0
    %v501 = vadd.f32 %v496, %v29
    %v502 = vtanh.pop %v501
    %v503 = vpack.c.bf16 %v502, %v502
    %504 = vmatprep.subr.bf16.mxu0 0
    %505 = vmatpush1.bf16.msra.mxu0 %v68
    %506 = vmatprep.subr.bf16.mxu0 0
    %507 = vmatpush1.bf16.msra.mxu0 %v69
    %508 = vmatprep.subr.bf16.mxu0 0
    %509 = vmatpush1.bf16.msra.mxu0 0
    %510 = vmatprep.subr.bf16.mxu0 0
    %511 = vmatpush1.bf16.msra.mxu0 0
    %512 = vmatprep.subr.bf16.mxu0 0
    %513 = vmatpush1.bf16.msra.mxu0 0
    %514 = vmatprep.subr.bf16.mxu0 0
    %515 = vmatpush1.bf16.msra.mxu0 0
    %516 = vmatprep.subr.bf16.mxu0 0
    %517 = vmatpush1.bf16.msra.mxu0 0
    %518 = vmatprep.subr.bf16.mxu0 0
    %519 = vmatpush1.bf16.msra.mxu0 0
    %520 = vmatprep.subr.bf16.mxu0 0
    %521 = vmatpush1.bf16.msra.mxu0 0
    %522 = vmatprep.subr.bf16.mxu0 0
    %523 = vmatpush1.bf16.msra.mxu0 0
    %524 = vmatprep.subr.bf16.mxu0 0
    %525 = vmatpush1.bf16.msra.mxu0 0
    %526 = vmatprep.subr.bf16.mxu0 0
    %527 = vmatpush1.bf16.msra.mxu0 0
    %528 = vmatprep.subr.bf16.mxu0 0
    %529 = vmatpush1.bf16.msra.mxu0 0
    %530 = vmatprep.subr.bf16.mxu0 0
    %531 = vmatpush1.bf16.msra.mxu0 0
    %532 = vmatprep.subr.bf16.mxu0 0
    %533 = vmatpush1.bf16.msra.mxu0 0
    %534 = vmatprep.subr.bf16.mxu0 0
    %535 = vmatpush1.bf16.msra.mxu0 0
    %536 = vmatprep.mubr.bf16.mxu0 0
    %537 = vmatmul.mubr.bf16.gmra.mrb[0].mxu0 %v459
    %v538 = vpop.f32.mrb[0].mxu0
    %v539 = vadd.f32 0.0, %v538
    %v540 = vpop.f32.mrb[0].mxu0
    %v541 = vpop.f32.mrb[0].mxu0
    %v542 = vpop.f32.mrb[0].mxu0
    %543 = vdwg.mxu0
    %v545 = vrot.slane %v539, 5
    %v547 = vadd.f32 %v59, %v545
    %v548 = vtanh.pop %v547
    %v549 = vpack.c.bf16 %v548, %v548
    %v551 = vsel %vm72, %v503, 0
    %553 = vmatprep.subr.bf16.mxu0 0
    %554 = vmatpush1.bf16.msra.mxu0 %v127
    %555 = vmatprep.subr.bf16.mxu0 0
    %556 = vmatpush1.bf16.msra.mxu0 %v128
    %557 = vmatprep.subr.bf16.mxu0 0
    %558 = vmatpush1.bf16.msra.mxu0 0
    %559 = vmatprep.subr.bf16.mxu0 0
    %560 = vmatpush1.bf16.msra.mxu0 0
    %561 = vmatprep.subr.bf16.mxu0 0
    %562 = vmatpush1.bf16.msra.mxu0 0
    %563 = vmatprep.subr.bf16.mxu0 0
    %564 = vmatpush1.bf16.msra.mxu0 0
    %565 = vmatprep.subr.bf16.mxu0 0
    %566 = vmatpush1.bf16.msra.mxu0 0
    %567 = vmatprep.subr.bf16.mxu0 0
    %568 = vmatpush1.bf16.msra.mxu0 0
    %569 = vmatprep.subr.bf16.mxu0 0
    %570 = vmatpush1.bf16.msra.mxu0 0
    %571 = vmatprep.subr.bf16.mxu0 0
    %572 = vmatpush1.bf16.msra.mxu0 0
    %573 = vmatprep.subr.bf16.mxu0 0
    %574 = vmatpush1.bf16.msra.mxu0 0
    %575 = vmatprep.subr.bf16.mxu0 0
    %576 = vmatpush1.bf16.msra.mxu0 0
    %577 = vmatprep.subr.bf16.mxu0 0
    %578 = vmatpush1.bf16.msra.mxu0 0
    %579 = vmatprep.subr.bf16.mxu0 0
    %580 = vmatpush1.bf16.msra.mxu0 0
    %581 = vmatprep.subr.bf16.mxu0 0
    %582 = vmatpush1.bf16.msra.mxu0 0
    %583 = vmatprep.subr.bf16.mxu0 0
    %584 = vmatpush1.bf16.msra.mxu0 0
    %585 = vmatprep.mubr.bf16.mxu0 0
    %586 = vmatmul.mubr.bf16.gmra.mrb[0].mxu0 %v551
    %v587 = vpop.f32.mrb[0].mxu0
    %v588 = vadd.f32 0.0, %v587
    %v589 = vpop.f32.mrb[0].mxu0
    %v590 = vpop.f32.mrb[0].mxu0
    %v591 = vpop.f32.mrb[0].mxu0
    %592 = vdwg.mxu0
    %v594 = vshrl.u32 %v549, 16
    %v596 = vrot.slane %v594, 1
    %v598 = vsel %vm72, %v596, 0
    %600 = vmatprep.subr.bf16.mxu0 0
    %601 = vmatpush1.bf16.msra.mxu0 %v179
    %602 = vmatprep.subr.bf16.mxu0 0
    %603 = vmatpush1.bf16.msra.mxu0 %v180
    %604 = vmatprep.subr.bf16.mxu0 0
    %605 = vmatpush1.bf16.msra.mxu0 0
    %606 = vmatprep.subr.bf16.mxu0 0
    %607 = vmatpush1.bf16.msra.mxu0 0
    %608 = vmatprep.subr.bf16.mxu0 0
    %609 = vmatpush1.bf16.msra.mxu0 0
    %610 = vmatprep.subr.bf16.mxu0 0
    %611 = vmatpush1.bf16.msra.mxu0 0
    %612 = vmatprep.subr.bf16.mxu0 0
    %613 = vmatpush1.bf16.msra.mxu0 0
    %614 = vmatprep.subr.bf16.mxu0 0
    %615 = vmatpush1.bf16.msra.mxu0 0
    %616 = vmatprep.subr.bf16.mxu0 0
    %617 = vmatpush1.bf16.msra.mxu0 0
    %618 = vmatprep.subr.bf16.mxu0 0
    %619 = vmatpush1.bf16.msra.mxu0 0
    %620 = vmatprep.subr.bf16.mxu0 0
    %621 = vmatpush1.bf16.msra.mxu0 0
    %622 = vmatprep.subr.bf16.mxu0 0
    %623 = vmatpush1.bf16.msra.mxu0 0
    %624 = vmatprep.subr.bf16.mxu0 0
    %625 = vmatpush1.bf16.msra.mxu0 0
    %626 = vmatprep.subr.bf16.mxu0 0
    %627 = vmatpush1.bf16.msra.mxu0 0
    %628 = vmatprep.subr.bf16.mxu0 0
    %629 = vmatpush1.bf16.msra.mxu0 0
    %630 = vmatprep.subr.bf16.mxu0 0
    %631 = vmatpush1.bf16.msra.mxu0 0
    %632 = vmatprep.mubr.bf16.mxu0 0
    %633 = vmatmul.mubr.bf16.gmra.mrb[0].mxu0 %v598
    %v634 = vpop.f32.mrb[0].mxu0
    %v635 = vadd.f32 %v588, %v634
    %v636 = vpop.f32.mrb[0].mxu0
    %v637 = vpop.f32.mrb[0].mxu0
    %v638 = vpop.f32.mrb[0].mxu0
    %639 = vdwg.mxu0
    %v640 = vadd.f32 %v635, %v29
    %v641 = vtanh.pop %v640
    %v642 = vpack.c.bf16 %v641, %v641
    %643 = vmatprep.subr.bf16.mxu0 0
    %644 = vmatpush1.bf16.msra.mxu0 %v68
    %645 = vmatprep.subr.bf16.mxu0 0
    %646 = vmatpush1.bf16.msra.mxu0 %v69
    %647 = vmatprep.subr.bf16.mxu0 0
    %648 = vmatpush1.bf16.msra.mxu0 0
    %649 = vmatprep.subr.bf16.mxu0 0
    %650 = vmatpush1.bf16.msra.mxu0 0
    %651 = vmatprep.subr.bf16.mxu0 0
    %652 = vmatpush1.bf16.msra.mxu0 0
    %653 = vmatprep.subr.bf16.mxu0 0
    %654 = vmatpush1.bf16.msra.mxu0 0
    %655 = vmatprep.subr.bf16.mxu0 0
    %656 = vmatpush1.bf16.msra.mxu0 0
    %657 = vmatprep.subr.bf16.mxu0 0
    %658 = vmatpush1.bf16.msra.mxu0 0
    %659 = vmatprep.subr.bf16.mxu0 0
    %660 = vmatpush1.bf16.msra.mxu0 0
    %661 = vmatprep.subr.bf16.mxu0 0
    %662 = vmatpush1.bf16.msra.mxu0 0
    %663 = vmatprep.subr.bf16.mxu0 0
    %664 = vmatpush1.bf16.msra.mxu0 0
    %665 = vmatprep.subr.bf16.mxu0 0
    %666 = vmatpush1.bf16.msra.mxu0 0
    %667 = vmatprep.subr.bf16.mxu0 0
    %668 = vmatpush1.bf16.msra.mxu0 0
    %669 = vmatprep.subr.bf16.mxu0 0
    %670 = vmatpush1.bf16.msra.mxu0 0
    %671 = vmatprep.subr.bf16.mxu0 0
    %672 = vmatpush1.bf16.msra.mxu0 0
    %673 = vmatprep.subr.bf16.mxu0 0
    %674 = vmatpush1.bf16.msra.mxu0 0
    %675 = vmatprep.mubr.bf16.mxu0 0
    %676 = vmatmul.mubr.bf16.gmra.mrb[0].mxu0 %v598
    %v677 = vpop.f32.mrb[0].mxu0
    %v678 = vadd.f32 0.0, %v677
    %v679 = vpop.f32.mrb[0].mxu0
    %v680 = vpop.f32.mrb[0].mxu0
    %v681 = vpop.f32.mrb[0].mxu0
    %682 = vdwg.mxu0
    %v684 = vrot.slane %v678, 4
    %v686 = vadd.f32 %v59, %v684
    %v687 = vtanh.pop %v686
    %v688 = vpack.c.bf16 %v687, %v687
    %v690 = vsel %vm72, %v642, 0
    %692 = vmatprep.subr.bf16.mxu0 0
    %693 = vmatpush1.bf16.msra.mxu0 %v127
    %694 = vmatprep.subr.bf16.mxu0 0
    %695 = vmatpush1.bf16.msra.mxu0 %v128
    %696 = vmatprep.subr.bf16.mxu0 0
    %697 = vmatpush1.bf16.msra.mxu0 0
    %698 = vmatprep.subr.bf16.mxu0 0
    %699 = vmatpush1.bf16.msra.mxu0 0
    %700 = vmatprep.subr.bf16.mxu0 0
    %701 = vmatpush1.bf16.msra.mxu0 0
    %702 = vmatprep.subr.bf16.mxu0 0
    %703 = vmatpush1.bf16.msra.mxu0 0
    %704 = vmatprep.subr.bf16.mxu0 0
    %705 = vmatpush1.bf16.msra.mxu0 0
    %706 = vmatprep.subr.bf16.mxu0 0
    %707 = vmatpush1.bf16.msra.mxu0 0
    %708 = vmatprep.subr.bf16.mxu0 0
    %709 = vmatpush1.bf16.msra.mxu0 0
    %710 = vmatprep.subr.bf16.mxu0 0
    %711 = vmatpush1.bf16.msra.mxu0 0
    %712 = vmatprep.subr.bf16.mxu0 0
    %713 = vmatpush1.bf16.msra.mxu0 0
    %714 = vmatprep.subr.bf16.mxu0 0
    %715 = vmatpush1.bf16.msra.mxu0 0
    %716 = vmatprep.subr.bf16.mxu0 0
    %717 = vmatpush1.bf16.msra.mxu0 0
    %718 = vmatprep.subr.bf16.mxu0 0
    %719 = vmatpush1.bf16.msra.mxu0 0
    %720 = vmatprep.subr.bf16.mxu0 0
    %721 = vmatpush1.bf16.msra.mxu0 0
    %722 = vmatprep.subr.bf16.mxu0 0
    %723 = vmatpush1.bf16.msra.mxu0 0
    %724 = vmatprep.mubr.bf16.mxu0 0
    %725 = vmatmul.mubr.bf16.gmra.mrb[0].mxu0 %v690
    %v726 = vpop.f32.mrb[0].mxu0
    %v727 = vadd.f32 0.0, %v726
    %v728 = vpop.f32.mrb[0].mxu0
    %v729 = vpop.f32.mrb[0].mxu0
    %v730 = vpop.f32.mrb[0].mxu0
    %731 = vdwg.mxu0
    %v733 = vrot.slane %v688, 2
    %v735 = vsel %vm72, %v733, 0
    %737 = vmatprep.subr.bf16.mxu0 0
    %738 = vmatpush1.bf16.msra.mxu0 %v179
    %739 = vmatprep.subr.bf16.mxu0 0
    %740 = vmatpush1.bf16.msra.mxu0 %v180
    %741 = vmatprep.subr.bf16.mxu0 0
    %742 = vmatpush1.bf16.msra.mxu0 0
    %743 = vmatprep.subr.bf16.mxu0 0
    %744 = vmatpush1.bf16.msra.mxu0 0
    %745 = vmatprep.subr.bf16.mxu0 0
    %746 = vmatpush1.bf16.msra.mxu0 0
    %747 = vmatprep.subr.bf16.mxu0 0
    %748 = vmatpush1.bf16.msra.mxu0 0
    %749 = vmatprep.subr.bf16.mxu0 0
    %750 = vmatpush1.bf16.msra.mxu0 0
    %751 = vmatprep.subr.bf16.mxu0 0
    %752 = vmatpush1.bf16.msra.mxu0 0
    %753 = vmatprep.subr.bf16.mxu0 0
    %754 = vmatpush1.bf16.msra.mxu0 0
    %755 = vmatprep.subr.bf16.mxu0 0
    %756 = vmatpush1.bf16.msra.mxu0 0
    %757 = vmatprep.subr.bf16.mxu0 0
    %758 = vmatpush1.bf16.msra.mxu0 0
    %759 = vmatprep.subr.bf16.mxu0 0
    %760 = vmatpush1.bf16.msra.mxu0 0
    %761 = vmatprep.subr.bf16.mxu0 0
    %762 = vmatpush1.bf16.msra.mxu0 0
    %763 = vmatprep.subr.bf16.mxu0 0
    %764 = vmatpush1.bf16.msra.mxu0 0
    %765 = vmatprep.subr.bf16.mxu0 0
    %766 = vmatpush1.bf16.msra.mxu0 0
    %767 = vmatprep.subr.bf16.mxu0 0
    %768 = vmatpush1.bf16.msra.mxu0 0
    %769 = vmatprep.mubr.bf16.mxu0 0
    %770 = vmatmul.mubr.bf16.gmra.mrb[0].mxu0 %v735
    %v771 = vpop.f32.mrb[0].mxu0
    %v772 = vadd.f32 %v727, %v771
    %v773 = vpop.f32.mrb[0].mxu0
    %v774 = vpop.f32.mrb[0].mxu0
    %v775 = vpop.f32.mrb[0].mxu0
    %776 = vdwg.mxu0
    %v777 = vadd.f32 %v772, %v29
    %v778 = vtanh.pop %v777
    %v779 = vpack.c.bf16 %v778, %v778
    %780 = vmatprep.subr.bf16.mxu0 0
    %781 = vmatpush1.bf16.msra.mxu0 %v68
    %782 = vmatprep.subr.bf16.mxu0 0
    %783 = vmatpush1.bf16.msra.mxu0 %v69
    %784 = vmatprep.subr.bf16.mxu0 0
    %785 = vmatpush1.bf16.msra.mxu0 0
    %786 = vmatprep.subr.bf16.mxu0 0
    %787 = vmatpush1.bf16.msra.mxu0 0
    %788 = vmatprep.subr.bf16.mxu0 0
    %789 = vmatpush1.bf16.msra.mxu0 0
    %790 = vmatprep.subr.bf16.mxu0 0
    %791 = vmatpush1.bf16.msra.mxu0 0
    %792 = vmatprep.subr.bf16.mxu0 0
    %793 = vmatpush1.bf16.msra.mxu0 0
    %794 = vmatprep.subr.bf16.mxu0 0
    %795 = vmatpush1.bf16.msra.mxu0 0
    %796 = vmatprep.subr.bf16.mxu0 0
    %797 = vmatpush1.bf16.msra.mxu0 0
    %798 = vmatprep.subr.bf16.mxu0 0
    %799 = vmatpush1.bf16.msra.mxu0 0
    %800 = vmatprep.subr.bf16.mxu0 0
    %801 = vmatpush1.bf16.msra.mxu0 0
    %802 = vmatprep.subr.bf16.mxu0 0
    %803 = vmatpush1.bf16.msra.mxu0 0
    %804 = vmatprep.subr.bf16.mxu0 0
    %805 = vmatpush1.bf16.msra.mxu0 0
    %806 = vmatprep.subr.bf16.mxu0 0
    %807 = vmatpush1.bf16.msra.mxu0 0
    %808 = vmatprep.subr.bf16.mxu0 0
    %809 = vmatpush1.bf16.msra.mxu0 0
    %810 = vmatprep.subr.bf16.mxu0 0
    %811 = vmatpush1.bf16.msra.mxu0 0
    %812 = vmatprep.mubr.bf16.mxu0 0
    %813 = vmatmul.mubr.bf16.gmra.mrb[0].mxu0 %v735
    %v814 = vpop.f32.mrb[0].mxu0
    %v815 = vadd.f32 0.0, %v814
    %v816 = vpop.f32.mrb[0].mxu0
    %v817 = vpop.f32.mrb[0].mxu0
    %v818 = vpop.f32.mrb[0].mxu0
    %819 = vdwg.mxu0
    %v821 = vrot.slane %v815, 3
    %v823 = vadd.f32 %v59, %v821
    %v824 = vtanh.pop %v823
    %v825 = vpack.c.bf16 %v824, %v824
    %v827 = vsel %vm72, %v779, 0
    %829 = vmatprep.subr.bf16.mxu0 0
    %830 = vmatpush1.bf16.msra.mxu0 %v127
    %831 = vmatprep.subr.bf16.mxu0 0
    %832 = vmatpush1.bf16.msra.mxu0 %v128
    %833 = vmatprep.subr.bf16.mxu0 0
    %834 = vmatpush1.bf16.msra.mxu0 0
    %835 = vmatprep.subr.bf16.mxu0 0
    %836 = vmatpush1.bf16.msra.mxu0 0
    %837 = vmatprep.subr.bf16.mxu0 0
    %838 = vmatpush1.bf16.msra.mxu0 0
    %839 = vmatprep.subr.bf16.mxu0 0
    %840 = vmatpush1.bf16.msra.mxu0 0
    %841 = vmatprep.subr.bf16.mxu0 0
    %842 = vmatpush1.bf16.msra.mxu0 0
    %843 = vmatprep.subr.bf16.mxu0 0
    %844 = vmatpush1.bf16.msra.mxu0 0
    %845 = vmatprep.subr.bf16.mxu0 0
    %846 = vmatpush1.bf16.msra.mxu0 0
    %847 = vmatprep.subr.bf16.mxu0 0
    %848 = vmatpush1.bf16.msra.mxu0 0
    %849 = vmatprep.subr.bf16.mxu0 0
    %850 = vmatpush1.bf16.msra.mxu0 0
    %851 = vmatprep.subr.bf16.mxu0 0
    %852 = vmatpush1.bf16.msra.mxu0 0
    %853 = vmatprep.subr.bf16.mxu0 0
    %854 = vmatpush1.bf16.msra.mxu0 0
    %855 = vmatprep.subr.bf16.mxu0 0
    %856 = vmatpush1.bf16.msra.mxu0 0
    %857 = vmatprep.subr.bf16.mxu0 0
    %858 = vmatpush1.bf16.msra.mxu0 0
    %859 = vmatprep.subr.bf16.mxu0 0
    %860 = vmatpush1.bf16.msra.mxu0 0
    %861 = vmatprep.mubr.bf16.mxu0 0
    %862 = vmatmul.mubr.bf16.gmra.mrb[0].mxu0 %v827
    %v863 = vpop.f32.mrb[0].mxu0
    %v864 = vadd.f32 0.0, %v863
    %v865 = vpop.f32.mrb[0].mxu0
    %v866 = vpop.f32.mrb[0].mxu0
    %v867 = vpop.f32.mrb[0].mxu0
    %868 = vdwg.mxu0
    %v870 = vshrl.u32 %v825, 16
    %v872 = vrot.slane %v870, 2
    %v874 = vsel %vm72, %v872, 0
    %876 = vmatprep.subr.bf16.mxu0 0
    %877 = vmatpush1.bf16.msra.mxu0 %v179
    %878 = vmatprep.subr.bf16.mxu0 0
    %879 = vmatpush1.bf16.msra.mxu0 %v180
    %880 = vmatprep.subr.bf16.mxu0 0
    %881 = vmatpush1.bf16.msra.mxu0 0
    %882 = vmatprep.subr.bf16.mxu0 0
    %883 = vmatpush1.bf16.msra.mxu0 0
    %884 = vmatprep.subr.bf16.mxu0 0
    %885 = vmatpush1.bf16.msra.mxu0 0
    %886 = vmatprep.subr.bf16.mxu0 0
    %887 = vmatpush1.bf16.msra.mxu0 0
    %888 = vmatprep.subr.bf16.mxu0 0
    %889 = vmatpush1.bf16.msra.mxu0 0
    %890 = vmatprep.subr.bf16.mxu0 0
    %891 = vmatpush1.bf16.msra.mxu0 0
    %892 = vmatprep.subr.bf16.mxu0 0
    %893 = vmatpush1.bf16.msra.mxu0 0
    %894 = vmatprep.subr.bf16.mxu0 0
    %895 = vmatpush1.bf16.msra.mxu0 0
    %896 = vmatprep.subr.bf16.mxu0 0
    %897 = vmatpush1.bf16.msra.mxu0 0
    %898 = vmatprep.subr.bf16.mxu0 0
    %899 = vmatpush1.bf16.msra.mxu0 0
    %900 = vmatprep.subr.bf16.mxu0 0
    %901 = vmatpush1.bf16.msra.mxu0 0
    %902 = vmatprep.subr.bf16.mxu0 0
    %903 = vmatpush1.bf16.msra.mxu0 0
    %904 = vmatprep.subr.bf16.mxu0 0
    %905 = vmatpush1.bf16.msra.mxu0 0
    %906 = vmatprep.subr.bf16.mxu0 0
    %907 = vmatpush1.bf16.msra.mxu0 0
    %908 = vmatprep.mubr.bf16.mxu0 0
    %909 = vmatmul.mubr.bf16.gmra.mrb[0].mxu0 %v874
    %v910 = vpop.f32.mrb[0].mxu0
    %v911 = vadd.f32 %v864, %v910
    %v912 = vpop.f32.mrb[0].mxu0
    %v913 = vpop.f32.mrb[0].mxu0
    %v914 = vpop.f32.mrb[0].mxu0
    %915 = vdwg.mxu0
    %v916 = vadd.f32 %v911, %v29
    %v917 = vtanh.pop %v916
    %v918 = vpack.c.bf16 %v917, %v917
    %919 = vmatprep.subr.bf16.mxu0 0
    %920 = vmatpush1.bf16.msra.mxu0 %v68
    %921 = vmatprep.subr.bf16.mxu0 0
    %922 = vmatpush1.bf16.msra.mxu0 %v69
    %923 = vmatprep.subr.bf16.mxu0 0
    %924 = vmatpush1.bf16.msra.mxu0 0
    %925 = vmatprep.subr.bf16.mxu0 0
    %926 = vmatpush1.bf16.msra.mxu0 0
    %927 = vmatprep.subr.bf16.mxu0 0
    %928 = vmatpush1.bf16.msra.mxu0 0
    %929 = vmatprep.subr.bf16.mxu0 0
    %930 = vmatpush1.bf16.msra.mxu0 0
    %931 = vmatprep.subr.bf16.mxu0 0
    %932 = vmatpush1.bf16.msra.mxu0 0
    %933 = vmatprep.subr.bf16.mxu0 0
    %934 = vmatpush1.bf16.msra.mxu0 0
    %935 = vmatprep.subr.bf16.mxu0 0
    %936 = vmatpush1.bf16.msra.mxu0 0
    %937 = vmatprep.subr.bf16.mxu0 0
    %938 = vmatpush1.bf16.msra.mxu0 0
    %939 = vmatprep.subr.bf16.mxu0 0
    %940 = vmatpush1.bf16.msra.mxu0 0
    %941 = vmatprep.subr.bf16.mxu0 0
    %942 = vmatpush1.bf16.msra.mxu0 0
    %943 = vmatprep.subr.bf16.mxu0 0
    %944 = vmatpush1.bf16.msra.mxu0 0
    %945 = vmatprep.subr.bf16.mxu0 0
    %946 = vmatpush1.bf16.msra.mxu0 0
    %947 = vmatprep.subr.bf16.mxu0 0
    %948 = vmatpush1.bf16.msra.mxu0 0
    %949 = vmatprep.subr.bf16.mxu0 0
    %950 = vmatpush1.bf16.msra.mxu0 0
    %951 = vmatprep.mubr.bf16.mxu0 0
    %952 = vmatmul.mubr.bf16.gmra.mrb[0].mxu0 %v874
    %v953 = vpop.f32.mrb[0].mxu0
    %v954 = vadd.f32 0.0, %v953
    %v955 = vpop.f32.mrb[0].mxu0
    %v956 = vpop.f32.mrb[0].mxu0
    %v957 = vpop.f32.mrb[0].mxu0
    %958 = vdwg.mxu0
    %v960 = vrot.slane %v954, 2
    %v962 = vadd.f32 %v59, %v960
    %v963 = vtanh.pop %v962
    %v964 = vpack.c.bf16 %v963, %v963
    %v966 = vsel %vm72, %v918, 0
    %968 = vmatprep.subr.bf16.mxu0 0
    %969 = vmatpush1.bf16.msra.mxu0 %v127
    %970 = vmatprep.subr.bf16.mxu0 0
    %971 = vmatpush1.bf16.msra.mxu0 %v128
    %972 = vmatprep.subr.bf16.mxu0 0
    %973 = vmatpush1.bf16.msra.mxu0 0
    %974 = vmatprep.subr.bf16.mxu0 0
    %975 = vmatpush1.bf16.msra.mxu0 0
    %976 = vmatprep.subr.bf16.mxu0 0
    %977 = vmatpush1.bf16.msra.mxu0 0
    %978 = vmatprep.subr.bf16.mxu0 0
    %979 = vmatpush1.bf16.msra.mxu0 0
    %980 = vmatprep.subr.bf16.mxu0 0
    %981 = vmatpush1.bf16.msra.mxu0 0
    %982 = vmatprep.subr.bf16.mxu0 0
    %983 = vmatpush1.bf16.msra.mxu0 0
    %984 = vmatprep.subr.bf16.mxu0 0
    %985 = vmatpush1.bf16.msra.mxu0 0
    %986 = vmatprep.subr.bf16.mxu0 0
    %987 = vmatpush1.bf16.msra.mxu0 0
    %988 = vmatprep.subr.bf16.mxu0 0
    %989 = vmatpush1.bf16.msra.mxu0 0
    %990 = vmatprep.subr.bf16.mxu0 0
    %991 = vmatpush1.bf16.msra.mxu0 0
    %992 = vmatprep.subr.bf16.mxu0 0
    %993 = vmatpush1.bf16.msra.mxu0 0
    %994 = vmatprep.subr.bf16.mxu0 0
    %995 = vmatpush1.bf16.msra.mxu0 0
    %996 = vmatprep.subr.bf16.mxu0 0
    %997 = vmatpush1.bf16.msra.mxu0 0
    %998 = vmatprep.subr.bf16.mxu0 0
    %999 = vmatpush1.bf16.msra.mxu0 0
    %1000 = vmatprep.mubr.bf16.mxu0 0
    %1001 = vmatmul.mubr.bf16.gmra.mrb[0].mxu0 %v966
    %v1002 = vpop.f32.mrb[0].mxu0
    %v1003 = vadd.f32 0.0, %v1002
    %v1004 = vpop.f32.mrb[0].mxu0
    %v1005 = vpop.f32.mrb[0].mxu0
    %v1006 = vpop.f32.mrb[0].mxu0
    %1007 = vdwg.mxu0
    %v1009 = vrot.slane %v964, 3
    %v1011 = vsel %vm72, %v1009, 0
    %1013 = vmatprep.subr.bf16.mxu0 0
    %1014 = vmatpush1.bf16.msra.mxu0 %v179
    %1015 = vmatprep.subr.bf16.mxu0 0
    %1016 = vmatpush1.bf16.msra.mxu0 %v180
    %1017 = vmatprep.subr.bf16.mxu0 0
    %1018 = vmatpush1.bf16.msra.mxu0 0
    %1019 = vmatprep.subr.bf16.mxu0 0
    %1020 = vmatpush1.bf16.msra.mxu0 0
    %1021 = vmatprep.subr.bf16.mxu0 0
    %1022 = vmatpush1.bf16.msra.mxu0 0
    %1023 = vmatprep.subr.bf16.mxu0 0
    %1024 = vmatpush1.bf16.msra.mxu0 0
    %1025 = vmatprep.subr.bf16.mxu0 0
    %1026 = vmatpush1.bf16.msra.mxu0 0
    %1027 = vmatprep.subr.bf16.mxu0 0
    %1028 = vmatpush1.bf16.msra.mxu0 0
    %1029 = vmatprep.subr.bf16.mxu0 0
    %1030 = vmatpush1.bf16.msra.mxu0 0
    %1031 = vmatprep.subr.bf16.mxu0 0
    %1032 = vmatpush1.bf16.msra.mxu0 0
    %1033 = vmatprep.subr.bf16.mxu0 0
    %1034 = vmatpush1.bf16.msra.mxu0 0
    %1035 = vmatprep.subr.bf16.mxu0 0
    %1036 = vmatpush1.bf16.msra.mxu0 0
    %1037 = vmatprep.subr.bf16.mxu0 0
    %1038 = vmatpush1.bf16.msra.mxu0 0
    %1039 = vmatprep.subr.bf16.mxu0 0
    %1040 = vmatpush1.bf16.msra.mxu0 0
    %1041 = vmatprep.subr.bf16.mxu0 0
    %1042 = vmatpush1.bf16.msra.mxu0 0
    %1043 = vmatprep.subr.bf16.mxu0 0
    %1044 = vmatpush1.bf16.msra.mxu0 0
    %1045 = vmatprep.mubr.bf16.mxu0 0
    %1046 = vmatmul.mubr.bf16.gmra.mrb[0].mxu0 %v1011
    %v1047 = vpop.f32.mrb[0].mxu0
    %v1048 = vadd.f32 %v1003, %v1047
    %v1049 = vpop.f32.mrb[0].mxu0
    %v1050 = vpop.f32.mrb[0].mxu0
    %v1051 = vpop.f32.mrb[0].mxu0
    %1052 = vdwg.mxu0
    %v1053 = vadd.f32 %v1048, %v29
    %v1054 = vtanh.pop %v1053
    %v1055 = vpack.c.bf16 %v1054, %v1054
    %1056 = vmatprep.subr.bf16.mxu0 0
    %1057 = vmatpush1.bf16.msra.mxu0 %v68
    %1058 = vmatprep.subr.bf16.mxu0 0
    %1059 = vmatpush1.bf16.msra.mxu0 %v69
    %1060 = vmatprep.subr.bf16.mxu0 0
    %1061 = vmatpush1.bf16.msra.mxu0 0
    %1062 = vmatprep.subr.bf16.mxu0 0
    %1063 = vmatpush1.bf16.msra.mxu0 0
    %1064 = vmatprep.subr.bf16.mxu0 0
    %1065 = vmatpush1.bf16.msra.mxu0 0
    %1066 = vmatprep.subr.bf16.mxu0 0
    %1067 = vmatpush1.bf16.msra.mxu0 0
    %1068 = vmatprep.subr.bf16.mxu0 0
    %1069 = vmatpush1.bf16.msra.mxu0 0
    %1070 = vmatprep.subr.bf16.mxu0 0
    %1071 = vmatpush1.bf16.msra.mxu0 0
    %1072 = vmatprep.subr.bf16.mxu0 0
    %1073 = vmatpush1.bf16.msra.mxu0 0
    %1074 = vmatprep.subr.bf16.mxu0 0
    %1075 = vmatpush1.bf16.msra.mxu0 0
    %1076 = vmatprep.subr.bf16.mxu0 0
    %1077 = vmatpush1.bf16.msra.mxu0 0
    %1078 = vmatprep.subr.bf16.mxu0 0
    %1079 = vmatpush1.bf16.msra.mxu0 0
    %1080 = vmatprep.subr.bf16.mxu0 0
    %1081 = vmatpush1.bf16.msra.mxu0 0
    %1082 = vmatprep.subr.bf16.mxu0 0
    %1083 = vmatpush1.bf16.msra.mxu0 0
    %1084 = vmatprep.subr.bf16.mxu0 0
    %1085 = vmatpush1.bf16.msra.mxu0 0
    %1086 = vmatprep.subr.bf16.mxu0 0
    %1087 = vmatpush1.bf16.msra.mxu0 0
    %1088 = vmatprep.mubr.bf16.mxu0 0
    %1089 = vmatmul.mubr.bf16.gmra.mrb[0].mxu0 %v1011
    %v1090 = vpop.f32.mrb[0].mxu0
    %v1091 = vadd.f32 0.0, %v1090
    %v1092 = vpop.f32.mrb[0].mxu0
    %v1093 = vpop.f32.mrb[0].mxu0
    %v1094 = vpop.f32.mrb[0].mxu0
    %1095 = vdwg.mxu0
    %v1097 = vrot.slane %v1091, 1
    %v1099 = vadd.f32 %v59, %v1097
    %v1100 = vtanh.pop %v1099
    %v1101 = vpack.c.bf16 %v1100, %v1100
    %v1103 = vsel %vm72, %v1055, 0
    %1105 = vmatprep.subr.bf16.mxu0 0
    %1106 = vmatpush1.bf16.msra.mxu0 %v127
    %1107 = vmatprep.subr.bf16.mxu0 0
    %1108 = vmatpush1.bf16.msra.mxu0 %v128
    %1109 = vmatprep.subr.bf16.mxu0 0
    %1110 = vmatpush1.bf16.msra.mxu0 0
    %1111 = vmatprep.subr.bf16.mxu0 0
    %1112 = vmatpush1.bf16.msra.mxu0 0
    %1113 = vmatprep.subr.bf16.mxu0 0
    %1114 = vmatpush1.bf16.msra.mxu0 0
    %1115 = vmatprep.subr.bf16.mxu0 0
    %1116 = vmatpush1.bf16.msra.mxu0 0
    %1117 = vmatprep.subr.bf16.mxu0 0
    %1118 = vmatpush1.bf16.msra.mxu0 0
    %1119 = vmatprep.subr.bf16.mxu0 0
    %1120 = vmatpush1.bf16.msra.mxu0 0
    %1121 = vmatprep.subr.bf16.mxu0 0
    %1122 = vmatpush1.bf16.msra.mxu0 0
    %1123 = vmatprep.subr.bf16.mxu0 0
    %1124 = vmatpush1.bf16.msra.mxu0 0
    %1125 = vmatprep.subr.bf16.mxu0 0
    %1126 = vmatpush1.bf16.msra.mxu0 0
    %1127 = vmatprep.subr.bf16.mxu0 0
    %1128 = vmatpush1.bf16.msra.mxu0 0
    %1129 = vmatprep.subr.bf16.mxu0 0
    %1130 = vmatpush1.bf16.msra.mxu0 0
    %1131 = vmatprep.subr.bf16.mxu0 0
    %1132 = vmatpush1.bf16.msra.mxu0 0
    %1133 = vmatprep.subr.bf16.mxu0 0
    %1134 = vmatpush1.bf16.msra.mxu0 0
    %1135 = vmatprep.subr.bf16.mxu0 0
    %1136 = vmatpush1.bf16.msra.mxu0 0
    %1137 = vmatprep.mubr.bf16.mxu0 0
    %1138 = vmatmul.mubr.bf16.gmra.mrb[0].mxu0 %v1103
    %v1139 = vpop.f32.mrb[0].mxu0
    %v1140 = vadd.f32 0.0, %v1139
    %v1141 = vpop.f32.mrb[0].mxu0
    %v1142 = vpop.f32.mrb[0].mxu0
    %v1143 = vpop.f32.mrb[0].mxu0
    %1144 = vdwg.mxu0
    %v1146 = vshrl.u32 %v1101, 16
    %v1148 = vrot.slane %v1146, 3
    %v1150 = vsel %vm72, %v1148, 0
    %1152 = vmatprep.subr.bf16.mxu0 0
    %1153 = vmatpush1.bf16.msra.mxu0 %v179
    %1154 = vmatprep.subr.bf16.mxu0 0
    %1155 = vmatpush1.bf16.msra.mxu0 %v180
    %1156 = vmatprep.subr.bf16.mxu0 0
    %1157 = vmatpush1.bf16.msra.mxu0 0
    %1158 = vmatprep.subr.bf16.mxu0 0
    %1159 = vmatpush1.bf16.msra.mxu0 0
    %1160 = vmatprep.subr.bf16.mxu0 0
    %1161 = vmatpush1.bf16.msra.mxu0 0
    %1162 = vmatprep.subr.bf16.mxu0 0
    %1163 = vmatpush1.bf16.msra.mxu0 0
    %1164 = vmatprep.subr.bf16.mxu0 0
    %1165 = vmatpush1.bf16.msra.mxu0 0
    %1166 = vmatprep.subr.bf16.mxu0 0
    %1167 = vmatpush1.bf16.msra.mxu0 0
    %1168 = vmatprep.subr.bf16.mxu0 0
    %1169 = vmatpush1.bf16.msra.mxu0 0
    %1170 = vmatprep.subr.bf16.mxu0 0
    %1171 = vmatpush1.bf16.msra.mxu0 0
    %1172 = vmatprep.subr.bf16.mxu0 0
    %1173 = vmatpush1.bf16.msra.mxu0 0
    %1174 = vmatprep.subr.bf16.mxu0 0
    %1175 = vmatpush1.bf16.msra.mxu0 0
    %1176 = vmatprep.subr.bf16.mxu0 0
    %1177 = vmatpush1.bf16.msra.mxu0 0
    %1178 = vmatprep.subr.bf16.mxu0 0
    %1179 = vmatpush1.bf16.msra.mxu0 0
    %1180 = vmatprep.subr.bf16.mxu0 0
    %1181 = vmatpush1.bf16.msra.mxu0 0
    %1182 = vmatprep.subr.bf16.mxu0 0
    %1183 = vmatpush1.bf16.msra.mxu0 0
    %1184 = vmatprep.mubr.bf16.mxu0 0
    %1185 = vmatmul.mubr.bf16.gmra.mrb[0].mxu0 %v1150
    %v1186 = vpop.f32.mrb[0].mxu0
    %v1187 = vadd.f32 %v1140, %v1186
    %v1188 = vpop.f32.mrb[0].mxu0
    %v1189 = vpop.f32.mrb[0].mxu0
    %v1190 = vpop.f32.mrb[0].mxu0
    %1191 = vdwg.mxu0
    %v1192 = vadd.f32 %v1187, %v29
    %v1193 = vtanh.pop %v1192
    %v1195 = vrot.slane %v365, 7
    %v1198 = vrot.slane %v502, 6
    %v1201 = vrot.slane %v641, 5
    %v1204 = vrot.slane %v778, 4
    %v1207 = vrot.slane %v917, 3
    %v1210 = vrot.slane %v1054, 2
    %v1213 = vrot.slane %v1193, 1
    %vm1215 = vcmask 1040384
    %v1216 = vsel %vm1215, %v227, %v1195
    %vm1217 = vcmask 1041408
    %v1218 = vsel %vm1217, %v1216, %v1198
    %vm1219 = vcmask 1042432
    %v1220 = vsel %vm1219, %v1218, %v1201
    %vm1221 = vcmask 1043456
    %v1222 = vsel %vm1221, %v1220, %v1204
    %vm1223 = vcmask 1044480
    %v1224 = vsel %vm1223, %v1222, %v1207
    %vm1225 = vcmask 1045504
    %v1226 = vsel %vm1225, %v1224, %v1210
    %vm1227 = vcmask 1046528
    %v1228 = vsel %vm1227, %v1226, %v1213
    %1230 = vset.pattern.permute.xlu0 0
    %1231 = vperm.xlu0 %1230, %v31
    %v1232 = vpop.permute.xlu0 %1231
    %v1235 = vsel %vm72, %v30, 0
    %v1238 = vsel %vm72, %v1228, 0
    %1240 = vmatprep.subr.mxu0 0.0
    %1241 = vmatpush1.xpose.msra.mxu0 %v1238
    %1242 = vmatprep.subr.mxu0 0.0
    %1243 = vmatpush1.xpose.msra.mxu0 0.0
    %1244 = vmatprep.subr.mxu0 0.0
    %1245 = vmatpush1.xpose.msra.mxu0 0.0
    %1246 = vmatprep.subr.mxu0 0.0
    %1247 = vmatpush1.xpose.msra.mxu0 0.0
    %1248 = vmatprep.subr.mxu0 0.0
    %1249 = vmatpush1.xpose.msra.mxu0 0.0
    %1250 = vmatprep.subr.mxu0 0.0
    %1251 = vmatpush1.xpose.msra.mxu0 0.0
    %1252 = vmatprep.subr.mxu0 0.0
    %1253 = vmatpush1.xpose.msra.mxu0 0.0
    %1254 = vmatprep.subr.mxu0 0.0
    %1255 = vmatpush1.xpose.msra.mxu0 0.0
    %1256 = vmatprep.subr.mxu0 0.0
    %1257 = vmatpush1.xpose.msra.mxu0 0.0
    %1258 = vmatprep.subr.mxu0 0.0
    %1259 = vmatpush1.xpose.msra.mxu0 0.0
    %1260 = vmatprep.subr.mxu0 0.0
    %1261 = vmatpush1.xpose.msra.mxu0 0.0
    %1262 = vmatprep.subr.mxu0 0.0
    %1263 = vmatpush1.xpose.msra.mxu0 0.0
    %1264 = vmatprep.subr.mxu0 0.0
    %1265 = vmatpush1.xpose.msra.mxu0 0.0
    %1266 = vmatprep.subr.mxu0 0.0
    %1267 = vmatpush1.xpose.msra.mxu0 0.0
    %1268 = vmatprep.subr.mxu0 0.0
    %1269 = vmatpush1.xpose.msra.mxu0 0.0
    %1270 = vmatprep.subr.mxu0 0.0
    %1271 = vmatpush1.xpose.msra.mxu0 0.0
    %1272 = vmatprep.subr.mxu0 0.0
    %1273 = vmatpush1.xpose.msra.mxu0 0.0
    %1274 = vmatprep.subr.mxu0 0.0
    %1275 = vmatpush1.xpose.msra.mxu0 0.0
    %1276 = vmatprep.subr.mxu0 0.0
    %1277 = vmatpush1.xpose.msra.mxu0 0.0
    %1278 = vmatprep.subr.mxu0 0.0
    %1279 = vmatpush1.xpose.msra.mxu0 0.0
    %1280 = vmatprep.subr.mxu0 0.0
    %1281 = vmatpush1.xpose.msra.mxu0 0.0
    %1282 = vmatprep.subr.mxu0 0.0
    %1283 = vmatpush1.xpose.msra.mxu0 0.0
    %1284 = vmatprep.subr.mxu0 0.0
    %1285 = vmatpush1.xpose.msra.mxu0 0.0
    %1286 = vmatprep.subr.mxu0 0.0
    %1287 = vmatpush1.xpose.msra.mxu0 0.0
    %1288 = vmatprep.subr.mxu0 0.0
    %1289 = vmatpush1.xpose.msra.mxu0 0.0
    %1290 = vmatprep.subr.mxu0 0.0
    %1291 = vmatpush1.xpose.msra.mxu0 0.0
    %1292 = vmatprep.subr.mxu0 0.0
    %1293 = vmatpush1.xpose.msra.mxu0 0.0
    %1294 = vmatprep.subr.mxu0 0.0
    %1295 = vmatpush1.xpose.msra.mxu0 0.0
    %1296 = vmatprep.subr.mxu0 0.0
    %1297 = vmatpush1.xpose.msra.mxu0 0.0
    %1298 = vmatprep.subr.mxu0 0.0
    %1299 = vmatpush1.xpose.msra.mxu0 0.0
    %1300 = vmatprep.subr.mxu0 0.0
    %1301 = vmatpush1.xpose.msra.mxu0 0.0
    %1302 = vmatprep.subr.mxu0 0.0
    %1303 = vmatpush1.xpose.msra.mxu0 0.0
    %1304 = vmatprep.mubr.f32.mxu0 0.0
    %1305 = vmatmul.mubr.f32.gmra.mrb[0].mxu0 %v1235
    %v1306 = vpop.f32.mrb[0].mxu0
    %v1307 = vadd.f32 %v1232, %v1306
    %v1308 = vpop.f32.mrb[0].mxu0
    %1309 = vdwg.mxu0
    %vm1310 = vcmask 57344
    %1311 = vst.msk [vmem:[#allocation2] sm:$0x1] %vm1310, %v1307
    // Predicated region
    $region14: #{tpu_custom_call.1} parent=1 // pred_check
      _
    $region15: #{tpu_custom_call.1} parent=1 // pred_check_branch
      %1313 = sbr.rel (0) target = $region17
    $region16: #{tpu_custom_call.1} parent=1 // pred_region
      %s1315 = ssub.s32 16, 16
      %1316 = vsyncadd [#allocation3], %s1315
      %s1318 = sshll.u32 [#allocation2], 4
      %s1319 = int_to_ptr.vmem [resolvable:$true] %s1318
      %1321 = dma.vmem_to_hbm [thread:$0]  %s1319, 16, %s3, [#allocation3]
    $region17: #{tpu_custom_call.1} parent=1 // pred_fallthru
      _
    // Predicated region
    $region18: #{tpu_custom_call.1} parent=1 // pred_check
      _
    $region19: #{tpu_custom_call.1} parent=1 // pred_check_branch
      %1323 = sbr.rel (0) target = $region21
    $region20: #{tpu_custom_call.1} parent=1 // pred_region
      %1324 = dma.done [#allocation3], 16
    $region21: #{tpu_custom_call.1} parent=1 // pred_fallthru
      _
    %1325 = vsyncpa [#allocation3], 1

</llo_original>
